<compile_context>
chip_gen: v7x
topology: tpu7x:2x2x1
jax: 0.10.0
libtpu: 0.0.40
codegen_flags: <defaults>
</compile_context>

<pallas_src>
import jax
import jax.numpy as jnp
from jax import lax
from jax.experimental import pallas as pl
from jax.experimental.pallas import tpu as pltpu


def _round_up(x, m):
    return (x + m - 1) // m * m


# ----------------------------- kernels ---------------------------------------


def _rnn_block_kernel(lens_ref, x_ref, wih_ref, whh_ref, brnn_ref,
                      out_ref, h_ref, xp_ref):
    # lens_ref: (B_BLK, 1)        int32   sequence lengths
    # x_ref:    (T_BLK, B_BLK, I) bf16    input block (time-major)
    # wih_ref:  (I, Hp)           bf16    W_ih^T  (H zero-padded to Hp)
    # whh_ref:  (Hp, Hp)          bf16    W_hh^T
    # brnn_ref: (1, Hp)           f32     b_ih + b_hh
    # out_ref:  (T_BLK, B_BLK, Hp) bf16   rnn_out block (pad_packed zeros)
    # h_ref:    (B_BLK, Hp)       f32 scratch  hidden state carried across blocks
    # xp_ref:   (T_BLK, B_BLK, Hp) f32 scratch  block input projection
    t_blk = pl.program_id(1)

    @pl.when(t_blk == 0)
    def _():
        h_ref[...] = jnp.zeros_like(h_ref)

    tb, bb, _ = x_ref.shape
    hp = out_ref.shape[-1]

    # Fused input projection for the whole time block: one large MXU matmul,
    # off the serial h-chain, f32 accumulation.
    xp = jnp.dot(x_ref[...].reshape(tb * bb, -1), wih_ref[...],
                 preferred_element_type=jnp.float32) + brnn_ref[...]
    xp_ref[...] = xp.reshape(tb, bb, hp)

    whh = whh_ref[...]            # resident bf16 weights, hoisted out of the loop
    lens = lens_ref[...]          # (bb, 1) int32
    t0 = t_blk * tb

    def step(s, h):
        pre = xp_ref[s] + jnp.dot(h.astype(whh.dtype), whh,
                                  preferred_element_type=jnp.float32)
        h_new = jnp.tanh(pre)
        valid = lens > (t0 + s)                                  # (bb, 1) in-kernel mask
        out_ref[s] = jnp.where(valid, h_new, 0.0).astype(out_ref.dtype)
        return jnp.where(valid, h_new, h)                        # freeze h past x_len[b]

    # Bounded unroll (review: avoid full-T unroll); carry stays f32.
    h_ref[...] = lax.fori_loop(0, tb, step, h_ref[...], unroll=min(tb, 8))


def _mlp_head_kernel(r_ref, w1_ref, b1_ref, w2_ref, b2_ref, w3_ref, b3_ref, o_ref):
    tb, bb, hp = r_ref.shape
    op = o_ref.shape[-1]
    a = jnp.maximum(r_ref[...], 0.0).reshape(tb * bb, hp)        # ReLU, stays bf16
    z1 = jnp.maximum(
        jnp.dot(a, w1_ref[...], preferred_element_type=jnp.float32) + b1_ref[...], 0.0)
    z2 = jnp.maximum(
        jnp.dot(z1.astype(w2_ref.dtype), w2_ref[...],
                preferred_element_type=jnp.float32) + b2_ref[...], 0.0)
    y = jnp.dot(z2.astype(w3_ref.dtype), w3_ref[...],
                preferred_element_type=jnp.float32) + b3_ref[...]
    o_ref[...] = y.reshape(tb, bb, op).astype(o_ref.dtype)


# ----------------------------- wrapper ----------------------------------------


@jax.jit
def my_rnn_forward(x, x_len, params):
    """x: (B, T, I) batch-first float32; x_len: (B,) int32. Returns (B, T, O) f32."""
    B, T, I = x.shape
    H = params["w_hh"].shape[0]
    O = params["w3"].shape[0]

    f32 = jnp.float32
    cdt = jnp.bfloat16                      # MXU input dtype (review: bf16 fast path)

    Hp = _round_up(H, 128)                  # lane-dense hidden dim
    Op = _round_up(O, 128)                  # lane-dense output stores
    Bp = _round_up(B, 8)                    # sublane-aligned batch
    # Batch split across TensorCores (v7x megacore); keep blocks bf16-tile aligned.
    NB = 2 if (Bp % 32 == 0) else 1
    B_BLK = Bp // NB

    # Time block: bounded unroll, decent rows for the fused input-projection matmul.
    T_BLK = max(1, min(T, 16, max(1, 512 // Bp)))
    Tp = _round_up(T, T_BLK)
    NT = Tp // T_BLK
    # Head time block: largest multiple of T_BLK dividing Tp with <= ~512 rows.
    KH = 1
    for k in range(NT, 0, -1):
        if NT % k == 0 and k * T_BLK * Bp <= 512:
            KH = k
            break
    T_BLK_H = T_BLK * KH
    NTH = Tp // T_BLK_H

    # ---- operand prep (time-major, zero-padded, bf16 weights, f32 biases) ----
    x_t = jnp.transpose(x, (1, 0, 2)).astype(cdt)                  # (T, B, I)
    x_t = jnp.pad(x_t, ((0, Tp - T), (0, Bp - B), (0, 0)))         # (Tp, Bp, I)
    lens = jnp.pad(x_len.astype(jnp.int32), (0, Bp - B)).reshape(Bp, 1)

    def padw(w, r, c):
        return jnp.pad(w, ((0, r - w.shape[0]), (0, c - w.shape[1])))

    wih_t = padw(params["w_ih"].T.astype(f32), I, Hp).astype(cdt)   # (I, Hp)
    whh_t = padw(params["w_hh"].T.astype(f32), Hp, Hp).astype(cdt)  # (Hp, Hp)
    b_rnn = jnp.pad((params["b_ih"] + params["b_hh"]).astype(f32), (0, Hp - H)).reshape(1, Hp)
    w1_t = padw(params["w1"].T.astype(f32), Hp, Hp).astype(cdt)
    b1 = jnp.pad(params["b1"].astype(f32), (0, Hp - H)).reshape(1, Hp)
    w2_t = padw(params["w2"].T.astype(f32), Hp, Hp).astype(cdt)
    b2 = jnp.pad(params["b2"].astype(f32), (0, Hp - H)).reshape(1, Hp)
    w3_t = padw(params["w3"].T.astype(f32), Hp, Op).astype(cdt)
    b3 = jnp.pad(params["b3"].astype(f32), (0, Op - O)).reshape(1, Op)

    one = pl.Buffered(1)   # single-buffer grid-invariant weights/biases

    # ---- stage A: fused input projection + time-blocked recurrence ----------
    rnn_vmem = int(
        2 * (T_BLK * B_BLK * I * 2)            # x blocks (bf16, double-buffered)
        + 2 * (T_BLK * B_BLK * Hp * 2)         # out blocks (bf16, double-buffered)
        + 2 * (B_BLK * 128 * 4)                # lens (lane-padded int32)
        + I * Hp * 2 + Hp * Hp * 2 + 8 * Hp * 4   # single-buffered weights/bias
        + B_BLK * Hp * 4 + T_BLK * B_BLK * Hp * 4  # h + xp scratch
    )
    rnn_limit = min(max(2 * rnn_vmem + (4 << 20), 32 << 20), 64 << 20)

    rnn_out = pl.pallas_call(
        _rnn_block_kernel,
        out_shape=jax.ShapeDtypeStruct((Tp, Bp, Hp), cdt),
        grid=(NB, NT),
        in_specs=[
            pl.BlockSpec((B_BLK, 1), lambda b, t: (b, 0)),
            pl.BlockSpec((T_BLK, B_BLK, I), lambda b, t: (t, b, 0)),
            pl.BlockSpec((I, Hp), lambda b, t: (0, 0), pipeline_mode=one),
            pl.BlockSpec((Hp, Hp), lambda b, t: (0, 0), pipeline_mode=one),
            pl.BlockSpec((1, Hp), lambda b, t: (0, 0), pipeline_mode=one),
        ],
        out_specs=pl.BlockSpec((T_BLK, B_BLK, Hp), lambda b, t: (t, b, 0)),
        scratch_shapes=[pltpu.VMEM((B_BLK, Hp), f32),
                        pltpu.VMEM((T_BLK, B_BLK, Hp), f32)],
        compiler_params=pltpu.CompilerParams(
            dimension_semantics=("parallel", "arbitrary"),
            vmem_limit_bytes=rnn_limit),
    )(lens, x_t, wih_t, whh_t, b_rnn)

    # ---- stage B: ReLU + NeuralNet head, time-blocked "parallel" grid --------
    head_rows = T_BLK_H * Bp
    head_vmem = int(
        2 * (T_BLK_H * Bp * Hp * 2)            # rnn_out blocks (bf16)
        + 2 * (T_BLK_H * Bp * Op * 4)          # output blocks (f32)
        + 2 * Hp * Hp * 2 + Hp * Op * 2        # single-buffered weights
        + 8 * (2 * Hp + Op) * 4                # biases
        + 3 * head_rows * Hp * 4               # in-kernel a/z1/z2 headroom
    )
    head_limit = min(max(2 * head_vmem + (4 << 20), 32 << 20), 64 << 20)

    y = pl.pallas_call(
        _mlp_head_kernel,
        out_shape=jax.ShapeDtypeStruct((Tp, Bp, Op), f32),
        grid=(NTH,),
        in_specs=[
            pl.BlockSpec((T_BLK_H, Bp, Hp), lambda i: (i, 0, 0)),
            pl.BlockSpec((Hp, Hp), lambda i: (0, 0), pipeline_mode=one),
            pl.BlockSpec((1, Hp), lambda i: (0, 0), pipeline_mode=one),
            pl.BlockSpec((Hp, Hp), lambda i: (0, 0), pipeline_mode=one),
            pl.BlockSpec((1, Hp), lambda i: (0, 0), pipeline_mode=one),
            pl.BlockSpec((Hp, Op), lambda i: (0, 0), pipeline_mode=one),
            pl.BlockSpec((1, Op), lambda i: (0, 0), pipeline_mode=one),
        ],
        out_specs=pl.BlockSpec((T_BLK_H, Bp, Op), lambda i: (i, 0, 0)),
        compiler_params=pltpu.CompilerParams(
            dimension_semantics=("parallel",),
            vmem_limit_bytes=head_limit),
    )(rnn_out, w1_t, b1, w2_t, b2, w3_t, b3)

    y = y[:T, :B, :O]
    return jnp.transpose(y, (1, 0, 2))                             # (B, T, O)


# ----------------------------- reference & test -------------------------------


def _ref_forward_f32(x, x_len, p):
    """Pure-f32 JAX reference of the same forward pass."""
    B, T, I = x.shape
    H = p["w_hh"].shape[0]

    def step(h, inp):
        xt, t = inp
        h_new = jnp.tanh(xt @ p["w_ih"].T + p["b_ih"] + h @ p["w_hh"].T + p["b_hh"])
        valid = (x_len > t)[:, None]
        h = jnp.where(valid, h_new, h)
        out = jnp.where(valid, h_new, 0.0)
        return h, out

    h0 = jnp.zeros((B, H), jnp.float32)
    _, outs = lax.scan(step, h0, (jnp.transpose(x, (1, 0, 2)), jnp.arange(T)))
    outs = jnp.transpose(outs, (1, 0, 2))                          # (B, T, H)
    a = jnp.maximum(outs, 0.0)
    z1 = jnp.maximum(a @ p["w1"].T + p["b1"], 0.0)
    z2 = jnp.maximum(z1 @ p["w2"].T + p["b2"], 0.0)
    return z2 @ p["w3"].T + p["b3"]


def _init_params(key, input_size, hidden_size, output_size):
    ks = jax.random.split(key, 10)
    u = lambda k, shape, fan: jax.random.uniform(
        k, shape, jnp.float32, -1.0 / jnp.sqrt(fan), 1.0 / jnp.sqrt(fan))
    H, I, O = hidden_size, input_size, output_size
    return {
        "w_ih": u(ks[0], (H, I), H), "b_ih": u(ks[1], (H,), H),
        "w_hh": u(ks[2], (H, H), H), "b_hh": u(ks[3], (H,), H),
        "w1": u(ks[4], (H, H), H), "b1": u(ks[5], (H,), H),
        "w2": u(ks[6], (H, H), H), "b2": u(ks[7], (H,), H),
        "w3": u(ks[8], (O, H), H), "b3": u(ks[9], (O,), H),
    }


if __name__ == "__main__":
    # B=32 exercises the 2-TensorCore batch split (Bp % 32 == 0); still tiny.
    B, T, I, H, O = 32, 8, 16, 32, 8

    key = jax.random.PRNGKey(0)
    k_x, k_p, k_l = jax.random.split(key, 3)
    x = jax.random.normal(k_x, (B, T, I), jnp.float32)
    # descending lengths, as pack_padded_sequence(enforce_sorted=True) requires
    x_len = jnp.sort(jax.random.randint(k_l, (B,), 1, T + 1))[::-1].astype(jnp.int32)
    params = _init_params(k_p, I, H, O)

    # TODO(synk): extract_layer / self.input Linear are unused in the PyTorch
    # forward; all dropout layers have p=0 (identity) and are therefore omitted.

    y = jax.block_until_ready(my_rnn_forward(x, x_len, params))
    y_ref = jax.block_until_ready(_ref_forward_f32(x, x_len, params))

    assert y.shape == (B, T, O), y.shape
    err = float(jnp.max(jnp.abs(y - y_ref)))
    # Tolerance re-validated for bf16 MXU inputs vs the pure-f32 reference
    # (review correctness concern); h carry and accumulation stay f32.
    assert jnp.allclose(y, y_ref, atol=5e-2, rtol=5e-2), f"max abs err {err}"

    print("KERNEL_OK")
</pallas_src>

<mosaic_0001>
module attributes {stable_mosaic.version = 11 : i64} {
  func.func @_rnn_block_kernel(%arg0: i32, %arg1: i32, %arg2: memref<16x1xi32, #tpu.memory_space<vmem>>, %arg3: memref<8x16x16xbf16, #tpu.memory_space<vmem>>, %arg4: memref<16x128xbf16, #tpu.memory_space<vmem>>, %arg5: memref<128x128xbf16, #tpu.memory_space<vmem>>, %arg6: memref<1x128xf32, #tpu.memory_space<vmem>>, %arg7: memref<8x16x128xbf16, #tpu.memory_space<vmem>>, %arg8: memref<16x128xf32, #tpu.memory_space<vmem>>, %arg9: memref<8x16x128xf32, #tpu.memory_space<vmem>>) attributes {dimension_semantics = [#tpu.dimension_semantics<parallel>, #tpu.dimension_semantics<arbitrary>], iteration_bounds = array<i64: 2, 1>, scalar_prefetch = 0 : i64, scratch_operands = 2 : i64, tpu.core_type = #tpu.core_type<tc>, window_params = [{transform_indices = @transform_0, window_bounds = array<i64: 16, 1>}, {transform_indices = @transform_1, window_bounds = array<i64: 8, 16, 16>}, {pipeline_mode = #tpu.pipeline_mode<synchronous>, transform_indices = @transform_2, window_bounds = array<i64: 16, 128>}, {pipeline_mode = #tpu.pipeline_mode<synchronous>, transform_indices = @transform_3, window_bounds = array<i64: 128, 128>}, {pipeline_mode = #tpu.pipeline_mode<synchronous>, transform_indices = @transform_4, window_bounds = array<i64: 1, 128>}, {transform_indices = @transform_5, window_bounds = array<i64: 8, 16, 128>}]} {
    %c0_i32 = arith.constant 0 : i32
    %0 = arith.cmpi eq, %arg1, %c0_i32 : i32
    %1 = arith.extui %0 : i1 to i32
    %c0_i32_0 = arith.constant 0 : i32
    %2 = arith.cmpi ne, %1, %c0_i32_0 : i32
    scf.if %2 {
      %cst_68 = arith.constant 0.000000e+00 : f32
      %193 = vector.broadcast %cst_68 : f32 to vector<16x128xf32>
      %c0_69 = arith.constant 0 : index
      %c0_70 = arith.constant 0 : index
      %194 = vector.load %arg8[%c0_69, %c0_70] : memref<16x128xf32, #tpu.memory_space<vmem>>, vector<16x128xf32>
      tpu.vector_store %arg8[%c0_69, %c0_70], %193 {strides = array<i32>} : memref<16x128xf32, #tpu.memory_space<vmem>>, vector<16x128xf32>,
    } else {
    }
    %c0 = arith.constant 0 : index
    %c0_1 = arith.constant 0 : index
    %c0_2 = arith.constant 0 : index
    %3 = vector.load %arg3[%c0, %c0_1, %c0_2] : memref<8x16x16xbf16, #tpu.memory_space<vmem>>, vector<8x16x16xbf16>
    %4 = vector.shape_cast %3 : vector<8x16x16xbf16> to vector<128x16xbf16>
    %c0_3 = arith.constant 0 : index
    %c0_4 = arith.constant 0 : index
    %5 = vector.load %arg4[%c0_3, %c0_4] : memref<16x128xbf16, #tpu.memory_space<vmem>>, vector<16x128xbf16>
    %cst = arith.constant dense<0.000000e+00> : vector<128x128xf32>
    %6 = tpu.matmul %4, %5, %cst {dimension_numbers = #tpu.dot_dimension_numbers<[1], [0], [0], [1], [0, 0, 1, 1], [], []>} : vector<128x16xbf16>, vector<16x128xbf16>, vector<128x128xf32> -> vector<128x128xf32>
    %c0_5 = arith.constant 0 : index
    %c0_6 = arith.constant 0 : index
    %7 = vector.load %arg6[%c0_5, %c0_6] : memref<1x128xf32, #tpu.memory_space<vmem>>, vector<1x128xf32>
    %8 = vector.broadcast %7 : vector<1x128xf32> to vector<128x128xf32>
    %9 = arith.addf %6, %8 : vector<128x128xf32>
    %10 = vector.shape_cast %9 : vector<128x128xf32> to vector<8x16x128xf32>
    %c0_7 = arith.constant 0 : index
    %c0_8 = arith.constant 0 : index
    %c0_9 = arith.constant 0 : index
    %11 = vector.load %arg9[%c0_7, %c0_8, %c0_9] : memref<8x16x128xf32, #tpu.memory_space<vmem>>, vector<8x16x128xf32>
    tpu.vector_store %arg9[%c0_7, %c0_8, %c0_9], %10 {strides = array<i32>} : memref<8x16x128xf32, #tpu.memory_space<vmem>>, vector<8x16x128xf32>,
    %c0_10 = arith.constant 0 : index
    %c0_11 = arith.constant 0 : index
    %12 = vector.load %arg5[%c0_10, %c0_11] : memref<128x128xbf16, #tpu.memory_space<vmem>>, vector<128x128xbf16>
    %c0_12 = arith.constant 0 : index
    %c0_13 = arith.constant 0 : index
    %13 = vector.load %arg2[%c0_12, %c0_13] : memref<16x1xi32, #tpu.memory_space<vmem>>, vector<16x1xi32>
    %c8_i32 = arith.constant 8 : i32
    %14 = arith.muli %arg1, %c8_i32 : i32
    %c0_14 = arith.constant 0 : index
    %c0_15 = arith.constant 0 : index
    %15 = vector.load %arg8[%c0_14, %c0_15] : memref<16x128xf32, #tpu.memory_space<vmem>>, vector<16x128xf32>
    %c0_i32_16 = arith.constant 0 : i32
    %16 = arith.index_cast %c0_i32_16 : i32 to index
    %c0_17 = arith.constant 0 : index
    %c0_18 = arith.constant 0 : index
    %17 = vector.load %arg9[%16, %c0_17, %c0_18] : memref<8x16x128xf32, #tpu.memory_space<vmem>>, vector<1x16x128xf32>
    %18 = vector.shape_cast %17 : vector<1x16x128xf32> to vector<16x128xf32>
    %19 = arith.truncf %15 : vector<16x128xf32> to vector<16x128xbf16>
    %cst_19 = arith.constant dense<0.000000e+00> : vector<16x128xf32>
    %20 = tpu.matmul %19, %12, %cst_19 {dimension_numbers = #tpu.dot_dimension_numbers<[1], [0], [0], [1], [0, 0, 1, 1], [], []>} : vector<16x128xbf16>, vector<128x128xbf16>, vector<16x128xf32> -> vector<16x128xf32>
    %21 = arith.addf %18, %20 : vector<16x128xf32>
    %22 = math.tanh %21 : vector<16x128xf32>
    %23 = arith.addi %14, %c0_i32_16 : i32
    %24 = vector.broadcast %23 : i32 to vector<16x1xi32>
    %25 = arith.cmpi sgt, %13, %24 : vector<16x1xi32>
    %cst_20 = arith.constant 0.000000e+00 : f32
    %26 = vector.shape_cast %25 : vector<16x1xi1> to vector<16x1xi1>
    %27 = vector.broadcast %26 : vector<16x1xi1> to vector<16x128xi1>
    %28 = vector.broadcast %cst_20 : f32 to vector<16x128xf32>
    %29 = arith.select %27, %22, %28 : vector<16x128xi1>, vector<16x128xf32>
    %30 = arith.truncf %29 : vector<16x128xf32> to vector<16x128xbf16>
    %31 = arith.index_cast %c0_i32_16 : i32 to index
    %c0_21 = arith.constant 0 : index
    %c0_22 = arith.constant 0 : index
    %32 = vector.load %arg7[%31, %c0_21, %c0_22] : memref<8x16x128xbf16, #tpu.memory_space<vmem>>, vector<1x16x128xbf16>
    %33 = vector.shape_cast %32 : vector<1x16x128xbf16> to vector<16x128xbf16>
    %34 = vector.shape_cast %30 : vector<16x128xbf16> to vector<1x16x128xbf16>
    tpu.vector_store %arg7[%31, %c0_21, %c0_22], %34 {strides = array<i32>} : memref<8x16x128xbf16, #tpu.memory_space<vmem>>, vector<1x16x128xbf16>,
    %35 = vector.shape_cast %25 : vector<16x1xi1> to vector<16x1xi1>
    %36 = vector.broadcast %35 : vector<16x1xi1> to vector<16x128xi1>
    %37 = arith.select %36, %22, %15 : vector<16x128xi1>, vector<16x128xf32>
    %c1_i32 = arith.constant 1 : i32
    %38 = arith.index_cast %c1_i32 : i32 to index
    %c0_23 = arith.constant 0 : index
    %c0_24 = arith.constant 0 : index
    %39 = vector.load %arg9[%38, %c0_23, %c0_24] : memref<8x16x128xf32, #tpu.memory_space<vmem>>, vector<1x16x128xf32>
    %40 = vector.shape_cast %39 : vector<1x16x128xf32> to vector<16x128xf32>
    %41 = arith.truncf %37 : vector<16x128xf32> to vector<16x128xbf16>
    %cst_25 = arith.constant dense<0.000000e+00> : vector<16x128xf32>
    %42 = tpu.matmul %41, %12, %cst_25 {dimension_numbers = #tpu.dot_dimension_numbers<[1], [0], [0], [1], [0, 0, 1, 1], [], []>} : vector<16x128xbf16>, vector<128x128xbf16>, vector<16x128xf32> -> vector<16x128xf32>
    %43 = arith.addf %40, %42 : vector<16x128xf32>
    %44 = math.tanh %43 : vector<16x128xf32>
    %45 = arith.addi %14, %c1_i32 : i32
    %46 = vector.broadcast %45 : i32 to vector<16x1xi32>
    %47 = arith.cmpi sgt, %13, %46 : vector<16x1xi32>
    %cst_26 = arith.constant 0.000000e+00 : f32
    %48 = vector.shape_cast %47 : vector<16x1xi1> to vector<16x1xi1>
    %49 = vector.broadcast %48 : vector<16x1xi1> to vector<16x128xi1>
    %50 = vector.broadcast %cst_26 : f32 to vector<16x128xf32>
    %51 = arith.select %49, %44, %50 : vector<16x128xi1>, vector<16x128xf32>
    %52 = arith.truncf %51 : vector<16x128xf32> to vector<16x128xbf16>
    %53 = arith.index_cast %c1_i32 : i32 to index
    %c0_27 = arith.constant 0 : index
    %c0_28 = arith.constant 0 : index
    %54 = vector.load %arg7[%53, %c0_27, %c0_28] : memref<8x16x128xbf16, #tpu.memory_space<vmem>>, vector<1x16x128xbf16>
    %55 = vector.shape_cast %54 : vector<1x16x128xbf16> to vector<16x128xbf16>
    %56 = vector.shape_cast %52 : vector<16x128xbf16> to vector<1x16x128xbf16>
    tpu.vector_store %arg7[%53, %c0_27, %c0_28], %56 {strides = array<i32>} : memref<8x16x128xbf16, #tpu.memory_space<vmem>>, vector<1x16x128xbf16>,
    %57 = vector.shape_cast %47 : vector<16x1xi1> to vector<16x1xi1>
    %58 = vector.broadcast %57 : vector<16x1xi1> to vector<16x128xi1>
    %59 = arith.select %58, %44, %37 : vector<16x128xi1>, vector<16x128xf32>
    %c2_i32 = arith.constant 2 : i32
    %60 = arith.index_cast %c2_i32 : i32 to index
    %c0_29 = arith.constant 0 : index
    %c0_30 = arith.constant 0 : index
    %61 = vector.load %arg9[%60, %c0_29, %c0_30] : memref<8x16x128xf32, #tpu.memory_space<vmem>>, vector<1x16x128xf32>
    %62 = vector.shape_cast %61 : vector<1x16x128xf32> to vector<16x128xf32>
    %63 = arith.truncf %59 : vector<16x128xf32> to vector<16x128xbf16>
    %cst_31 = arith.constant dense<0.000000e+00> : vector<16x128xf32>
    %64 = tpu.matmul %63, %12, %cst_31 {dimension_numbers = #tpu.dot_dimension_numbers<[1], [0], [0], [1], [0, 0, 1, 1], [], []>} : vector<16x128xbf16>, vector<128x128xbf16>, vector<16x128xf32> -> vector<16x128xf32>
    %65 = arith.addf %62, %64 : vector<16x128xf32>
    %66 = math.tanh %65 : vector<16x128xf32>
    %67 = arith.addi %14, %c2_i32 : i32
    %68 = vector.broadcast %67 : i32 to vector<16x1xi32>
    %69 = arith.cmpi sgt, %13, %68 : vector<16x1xi32>
    %cst_32 = arith.constant 0.000000e+00 : f32
    %70 = vector.shape_cast %69 : vector<16x1xi1> to vector<16x1xi1>
    %71 = vector.broadcast %70 : vector<16x1xi1> to vector<16x128xi1>
    %72 = vector.broadcast %cst_32 : f32 to vector<16x128xf32>
    %73 = arith.select %71, %66, %72 : vector<16x128xi1>, vector<16x128xf32>
    %74 = arith.truncf %73 : vector<16x128xf32> to vector<16x128xbf16>
    %75 = arith.index_cast %c2_i32 : i32 to index
    %c0_33 = arith.constant 0 : index
    %c0_34 = arith.constant 0 : index
    %76 = vector.load %arg7[%75, %c0_33, %c0_34] : memref<8x16x128xbf16, #tpu.memory_space<vmem>>, vector<1x16x128xbf16>
    %77 = vector.shape_cast %76 : vector<1x16x128xbf16> to vector<16x128xbf16>
    %78 = vector.shape_cast %74 : vector<16x128xbf16> to vector<1x16x128xbf16>
    tpu.vector_store %arg7[%75, %c0_33, %c0_34], %78 {strides = array<i32>} : memref<8x16x128xbf16, #tpu.memory_space<vmem>>, vector<1x16x128xbf16>,
    %79 = vector.shape_cast %69 : vector<16x1xi1> to vector<16x1xi1>
    %80 = vector.broadcast %79 : vector<16x1xi1> to vector<16x128xi1>
    %81 = arith.select %80, %66, %59 : vector<16x128xi1>, vector<16x128xf32>
    %c3_i32 = arith.constant 3 : i32
    %82 = arith.index_cast %c3_i32 : i32 to index
    %c0_35 = arith.constant 0 : index
    %c0_36 = arith.constant 0 : index
    %83 = vector.load %arg9[%82, %c0_35, %c0_36] : memref<8x16x128xf32, #tpu.memory_space<vmem>>, vector<1x16x128xf32>
    %84 = vector.shape_cast %83 : vector<1x16x128xf32> to vector<16x128xf32>
    %85 = arith.truncf %81 : vector<16x128xf32> to vector<16x128xbf16>
    %cst_37 = arith.constant dense<0.000000e+00> : vector<16x128xf32>
    %86 = tpu.matmul %85, %12, %cst_37 {dimension_numbers = #tpu.dot_dimension_numbers<[1], [0], [0], [1], [0, 0, 1, 1], [], []>} : vector<16x128xbf16>, vector<128x128xbf16>, vector<16x128xf32> -> vector<16x128xf32>
    %87 = arith.addf %84, %86 : vector<16x128xf32>
    %88 = math.tanh %87 : vector<16x128xf32>
    %89 = arith.addi %14, %c3_i32 : i32
    %90 = vector.broadcast %89 : i32 to vector<16x1xi32>
    %91 = arith.cmpi sgt, %13, %90 : vector<16x1xi32>
    %cst_38 = arith.constant 0.000000e+00 : f32
    %92 = vector.shape_cast %91 : vector<16x1xi1> to vector<16x1xi1>
    %93 = vector.broadcast %92 : vector<16x1xi1> to vector<16x128xi1>
    %94 = vector.broadcast %cst_38 : f32 to vector<16x128xf32>
    %95 = arith.select %93, %88, %94 : vector<16x128xi1>, vector<16x128xf32>
    %96 = arith.truncf %95 : vector<16x128xf32> to vector<16x128xbf16>
    %97 = arith.index_cast %c3_i32 : i32 to index
    %c0_39 = arith.constant 0 : index
    %c0_40 = arith.constant 0 : index
    %98 = vector.load %arg7[%97, %c0_39, %c0_40] : memref<8x16x128xbf16, #tpu.memory_space<vmem>>, vector<1x16x128xbf16>
    %99 = vector.shape_cast %98 : vector<1x16x128xbf16> to vector<16x128xbf16>
    %100 = vector.shape_cast %96 : vector<16x128xbf16> to vector<1x16x128xbf16>
    tpu.vector_store %arg7[%97, %c0_39, %c0_40], %100 {strides = array<i32>} : memref<8x16x128xbf16, #tpu.memory_space<vmem>>, vector<1x16x128xbf16>,
    %101 = vector.shape_cast %91 : vector<16x1xi1> to vector<16x1xi1>
    %102 = vector.broadcast %101 : vector<16x1xi1> to vector<16x128xi1>
    %103 = arith.select %102, %88, %81 : vector<16x128xi1>, vector<16x128xf32>
    %c4_i32 = arith.constant 4 : i32
    %104 = arith.index_cast %c4_i32 : i32 to index
    %c0_41 = arith.constant 0 : index
    %c0_42 = arith.constant 0 : index
    %105 = vector.load %arg9[%104, %c0_41, %c0_42] : memref<8x16x128xf32, #tpu.memory_space<vmem>>, vector<1x16x128xf32>
    %106 = vector.shape_cast %105 : vector<1x16x128xf32> to vector<16x128xf32>
    %107 = arith.truncf %103 : vector<16x128xf32> to vector<16x128xbf16>
    %cst_43 = arith.constant dense<0.000000e+00> : vector<16x128xf32>
    %108 = tpu.matmul %107, %12, %cst_43 {dimension_numbers = #tpu.dot_dimension_numbers<[1], [0], [0], [1], [0, 0, 1, 1], [], []>} : vector<16x128xbf16>, vector<128x128xbf16>, vector<16x128xf32> -> vector<16x128xf32>
    %109 = arith.addf %106, %108 : vector<16x128xf32>
    %110 = math.tanh %109 : vector<16x128xf32>
    %111 = arith.addi %14, %c4_i32 : i32
    %112 = vector.broadcast %111 : i32 to vector<16x1xi32>
    %113 = arith.cmpi sgt, %13, %112 : vector<16x1xi32>
    %cst_44 = arith.constant 0.000000e+00 : f32
    %114 = vector.shape_cast %113 : vector<16x1xi1> to vector<16x1xi1>
    %115 = vector.broadcast %114 : vector<16x1xi1> to vector<16x128xi1>
    %116 = vector.broadcast %cst_44 : f32 to vector<16x128xf32>
    %117 = arith.select %115, %110, %116 : vector<16x128xi1>, vector<16x128xf32>
    %118 = arith.truncf %117 : vector<16x128xf32> to vector<16x128xbf16>
    %119 = arith.index_cast %c4_i32 : i32 to index
    %c0_45 = arith.constant 0 : index
    %c0_46 = arith.constant 0 : index
    %120 = vector.load %arg7[%119, %c0_45, %c0_46] : memref<8x16x128xbf16, #tpu.memory_space<vmem>>, vector<1x16x128xbf16>
    %121 = vector.shape_cast %120 : vector<1x16x128xbf16> to vector<16x128xbf16>
    %122 = vector.shape_cast %118 : vector<16x128xbf16> to vector<1x16x128xbf16>
    tpu.vector_store %arg7[%119, %c0_45, %c0_46], %122 {strides = array<i32>} : memref<8x16x128xbf16, #tpu.memory_space<vmem>>, vector<1x16x128xbf16>,
    %123 = vector.shape_cast %113 : vector<16x1xi1> to vector<16x1xi1>
    %124 = vector.broadcast %123 : vector<16x1xi1> to vector<16x128xi1>
    %125 = arith.select %124, %110, %103 : vector<16x128xi1>, vector<16x128xf32>
    %c5_i32 = arith.constant 5 : i32
    %126 = arith.index_cast %c5_i32 : i32 to index
    %c0_47 = arith.constant 0 : index
    %c0_48 = arith.constant 0 : index
    %127 = vector.load %arg9[%126, %c0_47, %c0_48] : memref<8x16x128xf32, #tpu.memory_space<vmem>>, vector<1x16x128xf32>
    %128 = vector.shape_cast %127 : vector<1x16x128xf32> to vector<16x128xf32>
    %129 = arith.truncf %125 : vector<16x128xf32> to vector<16x128xbf16>
    %cst_49 = arith.constant dense<0.000000e+00> : vector<16x128xf32>
    %130 = tpu.matmul %129, %12, %cst_49 {dimension_numbers = #tpu.dot_dimension_numbers<[1], [0], [0], [1], [0, 0, 1, 1], [], []>} : vector<16x128xbf16>, vector<128x128xbf16>, vector<16x128xf32> -> vector<16x128xf32>
    %131 = arith.addf %128, %130 : vector<16x128xf32>
    %132 = math.tanh %131 : vector<16x128xf32>
    %133 = arith.addi %14, %c5_i32 : i32
    %134 = vector.broadcast %133 : i32 to vector<16x1xi32>
    %135 = arith.cmpi sgt, %13, %134 : vector<16x1xi32>
    %cst_50 = arith.constant 0.000000e+00 : f32
    %136 = vector.shape_cast %135 : vector<16x1xi1> to vector<16x1xi1>
    %137 = vector.broadcast %136 : vector<16x1xi1> to vector<16x128xi1>
    %138 = vector.broadcast %cst_50 : f32 to vector<16x128xf32>
    %139 = arith.select %137, %132, %138 : vector<16x128xi1>, vector<16x128xf32>
    %140 = arith.truncf %139 : vector<16x128xf32> to vector<16x128xbf16>
    %141 = arith.index_cast %c5_i32 : i32 to index
    %c0_51 = arith.constant 0 : index
    %c0_52 = arith.constant 0 : index
    %142 = vector.load %arg7[%141, %c0_51, %c0_52] : memref<8x16x128xbf16, #tpu.memory_space<vmem>>, vector<1x16x128xbf16>
    %143 = vector.shape_cast %142 : vector<1x16x128xbf16> to vector<16x128xbf16>
    %144 = vector.shape_cast %140 : vector<16x128xbf16> to vector<1x16x128xbf16>
    tpu.vector_store %arg7[%141, %c0_51, %c0_52], %144 {strides = array<i32>} : memref<8x16x128xbf16, #tpu.memory_space<vmem>>, vector<1x16x128xbf16>,
    %145 = vector.shape_cast %135 : vector<16x1xi1> to vector<16x1xi1>
    %146 = vector.broadcast %145 : vector<16x1xi1> to vector<16x128xi1>
    %147 = arith.select %146, %132, %125 : vector<16x128xi1>, vector<16x128xf32>
    %c6_i32 = arith.constant 6 : i32
    %148 = arith.index_cast %c6_i32 : i32 to index
    %c0_53 = arith.constant 0 : index
    %c0_54 = arith.constant 0 : index
    %149 = vector.load %arg9[%148, %c0_53, %c0_54] : memref<8x16x128xf32, #tpu.memory_space<vmem>>, vector<1x16x128xf32>
    %150 = vector.shape_cast %149 : vector<1x16x128xf32> to vector<16x128xf32>
    %151 = arith.truncf %147 : vector<16x128xf32> to vector<16x128xbf16>
    %cst_55 = arith.constant dense<0.000000e+00> : vector<16x128xf32>
    %152 = tpu.matmul %151, %12, %cst_55 {dimension_numbers = #tpu.dot_dimension_numbers<[1], [0], [0], [1], [0, 0, 1, 1], [], []>} : vector<16x128xbf16>, vector<128x128xbf16>, vector<16x128xf32> -> vector<16x128xf32>
    %153 = arith.addf %150, %152 : vector<16x128xf32>
    %154 = math.tanh %153 : vector<16x128xf32>
    %155 = arith.addi %14, %c6_i32 : i32
    %156 = vector.broadcast %155 : i32 to vector<16x1xi32>
    %157 = arith.cmpi sgt, %13, %156 : vector<16x1xi32>
    %cst_56 = arith.constant 0.000000e+00 : f32
    %158 = vector.shape_cast %157 : vector<16x1xi1> to vector<16x1xi1>
    %159 = vector.broadcast %158 : vector<16x1xi1> to vector<16x128xi1>
    %160 = vector.broadcast %cst_56 : f32 to vector<16x128xf32>
    %161 = arith.select %159, %154, %160 : vector<16x128xi1>, vector<16x128xf32>
    %162 = arith.truncf %161 : vector<16x128xf32> to vector<16x128xbf16>
    %163 = arith.index_cast %c6_i32 : i32 to index
    %c0_57 = arith.constant 0 : index
    %c0_58 = arith.constant 0 : index
    %164 = vector.load %arg7[%163, %c0_57, %c0_58] : memref<8x16x128xbf16, #tpu.memory_space<vmem>>, vector<1x16x128xbf16>
    %165 = vector.shape_cast %164 : vector<1x16x128xbf16> to vector<16x128xbf16>
    %166 = vector.shape_cast %162 : vector<16x128xbf16> to vector<1x16x128xbf16>
    tpu.vector_store %arg7[%163, %c0_57, %c0_58], %166 {strides = array<i32>} : memref<8x16x128xbf16, #tpu.memory_space<vmem>>, vector<1x16x128xbf16>,
    %167 = vector.shape_cast %157 : vector<16x1xi1> to vector<16x1xi1>
    %168 = vector.broadcast %167 : vector<16x1xi1> to vector<16x128xi1>
    %169 = arith.select %168, %154, %147 : vector<16x128xi1>, vector<16x128xf32>
    %c7_i32 = arith.constant 7 : i32
    %170 = arith.index_cast %c7_i32 : i32 to index
    %c0_59 = arith.constant 0 : index
    %c0_60 = arith.constant 0 : index
    %171 = vector.load %arg9[%170, %c0_59, %c0_60] : memref<8x16x128xf32, #tpu.memory_space<vmem>>, vector<1x16x128xf32>
    %172 = vector.shape_cast %171 : vector<1x16x128xf32> to vector<16x128xf32>
    %173 = arith.truncf %169 : vector<16x128xf32> to vector<16x128xbf16>
    %cst_61 = arith.constant dense<0.000000e+00> : vector<16x128xf32>
    %174 = tpu.matmul %173, %12, %cst_61 {dimension_numbers = #tpu.dot_dimension_numbers<[1], [0], [0], [1], [0, 0, 1, 1], [], []>} : vector<16x128xbf16>, vector<128x128xbf16>, vector<16x128xf32> -> vector<16x128xf32>
    %175 = arith.addf %172, %174 : vector<16x128xf32>
    %176 = math.tanh %175 : vector<16x128xf32>
    %177 = arith.addi %14, %c7_i32 : i32
    %178 = vector.broadcast %177 : i32 to vector<16x1xi32>
    %179 = arith.cmpi sgt, %13, %178 : vector<16x1xi32>
    %cst_62 = arith.constant 0.000000e+00 : f32
    %180 = vector.shape_cast %179 : vector<16x1xi1> to vector<16x1xi1>
    %181 = vector.broadcast %180 : vector<16x1xi1> to vector<16x128xi1>
    %182 = vector.broadcast %cst_62 : f32 to vector<16x128xf32>
    %183 = arith.select %181, %176, %182 : vector<16x128xi1>, vector<16x128xf32>
    %184 = arith.truncf %183 : vector<16x128xf32> to vector<16x128xbf16>
    %185 = arith.index_cast %c7_i32 : i32 to index
    %c0_63 = arith.constant 0 : index
    %c0_64 = arith.constant 0 : index
    %186 = vector.load %arg7[%185, %c0_63, %c0_64] : memref<8x16x128xbf16, #tpu.memory_space<vmem>>, vector<1x16x128xbf16>
    %187 = vector.shape_cast %186 : vector<1x16x128xbf16> to vector<16x128xbf16>
    %188 = vector.shape_cast %184 : vector<16x128xbf16> to vector<1x16x128xbf16>
    tpu.vector_store %arg7[%185, %c0_63, %c0_64], %188 {strides = array<i32>} : memref<8x16x128xbf16, #tpu.memory_space<vmem>>, vector<1x16x128xbf16>,
    %189 = vector.shape_cast %179 : vector<16x1xi1> to vector<16x1xi1>
    %190 = vector.broadcast %189 : vector<16x1xi1> to vector<16x128xi1>
    %191 = arith.select %190, %176, %169 : vector<16x128xi1>, vector<16x128xf32>
    %c8_i32_65 = arith.constant 8 : i32
    %c0_66 = arith.constant 0 : index
    %c0_67 = arith.constant 0 : index
    %192 = vector.load %arg8[%c0_66, %c0_67] : memref<16x128xf32, #tpu.memory_space<vmem>>, vector<16x128xf32>
    tpu.vector_store %arg8[%c0_66, %c0_67], %191 {strides = array<i32>} : memref<16x128xf32, #tpu.memory_space<vmem>>, vector<16x128xf32>,
    return
  }
  func.func @transform_0(%arg0: i32, %arg1: i32) -> (i32, i32) {
    %c0_i32 = arith.constant 0 : i32
    %c0_i32_0 = arith.constant 0 : i32
    return %arg0, %c0_i32 : i32, i32
  }
  func.func @transform_1(%arg0: i32, %arg1: i32) -> (i32, i32, i32) {
    %c0_i32 = arith.constant 0 : i32
    %c0_i32_0 = arith.constant 0 : i32
    return %arg1, %arg0, %c0_i32 : i32, i32, i32
  }
  func.func @transform_2(%arg0: i32, %arg1: i32) -> (i32, i32) {
    %c0_i32 = arith.constant 0 : i32
    %c0_i32_0 = arith.constant 0 : i32
    %c0_i32_1 = arith.constant 0 : i32
    return %c0_i32, %c0_i32_0 : i32, i32
  }
  func.func @transform_3(%arg0: i32, %arg1: i32) -> (i32, i32) {
    %c0_i32 = arith.constant 0 : i32
    %c0_i32_0 = arith.constant 0 : i32
    %c0_i32_1 = arith.constant 0 : i32
    return %c0_i32, %c0_i32_0 : i32, i32
  }
  func.func @transform_4(%arg0: i32, %arg1: i32) -> (i32, i32) {
    %c0_i32 = arith.constant 0 : i32
    %c0_i32_0 = arith.constant 0 : i32
    %c0_i32_1 = arith.constant 0 : i32
    return %c0_i32, %c0_i32_0 : i32, i32
  }
  func.func @transform_5(%arg0: i32, %arg1: i32) -> (i32, i32, i32) {
    %c0_i32 = arith.constant 0 : i32
    %c0_i32_0 = arith.constant 0 : i32
    return %arg1, %arg0, %c0_i32 : i32, i32, i32
  }
}

module attributes {stable_mosaic.version = 11 : i64} {
  func.func @_mlp_head_kernel(%arg0: i32, %arg1: memref<8x32x128xbf16, #tpu.memory_space<vmem>>, %arg2: memref<128x128xbf16, #tpu.memory_space<vmem>>, %arg3: memref<1x128xf32, #tpu.memory_space<vmem>>, %arg4: memref<128x128xbf16, #tpu.memory_space<vmem>>, %arg5: memref<1x128xf32, #tpu.memory_space<vmem>>, %arg6: memref<128x128xbf16, #tpu.memory_space<vmem>>, %arg7: memref<1x128xf32, #tpu.memory_space<vmem>>, %arg8: memref<8x32x128xf32, #tpu.memory_space<vmem>>) attributes {dimension_semantics = [#tpu.dimension_semantics<parallel>], iteration_bounds = array<i64: 1>, scalar_prefetch = 0 : i64, scratch_operands = 0 : i64, tpu.core_type = #tpu.core_type<tc>, window_params = [{transform_indices = @transform_0, window_bounds = array<i64: 8, 32, 128>}, {pipeline_mode = #tpu.pipeline_mode<synchronous>, transform_indices = @transform_1, window_bounds = array<i64: 128, 128>}, {pipeline_mode = #tpu.pipeline_mode<synchronous>, transform_indices = @transform_2, window_bounds = array<i64: 1, 128>}, {pipeline_mode = #tpu.pipeline_mode<synchronous>, transform_indices = @transform_3, window_bounds = array<i64: 128, 128>}, {pipeline_mode = #tpu.pipeline_mode<synchronous>, transform_indices = @transform_4, window_bounds = array<i64: 1, 128>}, {pipeline_mode = #tpu.pipeline_mode<synchronous>, transform_indices = @transform_5, window_bounds = array<i64: 128, 128>}, {pipeline_mode = #tpu.pipeline_mode<synchronous>, transform_indices = @transform_6, window_bounds = array<i64: 1, 128>}, {transform_indices = @transform_7, window_bounds = array<i64: 8, 32, 128>}]} {
    %c0 = arith.constant 0 : index
    %c0_0 = arith.constant 0 : index
    %c0_1 = arith.constant 0 : index
    %0 = vector.load %arg1[%c0, %c0_0, %c0_1] : memref<8x32x128xbf16, #tpu.memory_space<vmem>>, vector<8x32x128xbf16>
    %cst = arith.constant 0.000000e+00 : bf16
    %1 = vector.broadcast %cst : bf16 to vector<8x32x128xbf16>
    %2 = arith.maximumf %0, %1 : vector<8x32x128xbf16>
    %3 = vector.shape_cast %2 : vector<8x32x128xbf16> to vector<256x128xbf16>
    %c0_2 = arith.constant 0 : index
    %c0_3 = arith.constant 0 : index
    %4 = vector.load %arg2[%c0_2, %c0_3] : memref<128x128xbf16, #tpu.memory_space<vmem>>, vector<128x128xbf16>
    %cst_4 = arith.constant dense<0.000000e+00> : vector<256x128xf32>
    %5 = tpu.matmul %3, %4, %cst_4 {dimension_numbers = #tpu.dot_dimension_numbers<[1], [0], [0], [1], [0, 0, 1, 1], [], []>} : vector<256x128xbf16>, vector<128x128xbf16>, vector<256x128xf32> -> vector<256x128xf32>
    %c0_5 = arith.constant 0 : index
    %c0_6 = arith.constant 0 : index
    %6 = vector.load %arg3[%c0_5, %c0_6] : memref<1x128xf32, #tpu.memory_space<vmem>>, vector<1x128xf32>
    %7 = vector.broadcast %6 : vector<1x128xf32> to vector<256x128xf32>
    %8 = arith.addf %5, %7 : vector<256x128xf32>
    %cst_7 = arith.constant 0.000000e+00 : f32
    %9 = vector.broadcast %cst_7 : f32 to vector<256x128xf32>
    %10 = arith.maximumf %8, %9 : vector<256x128xf32>
    %11 = arith.truncf %10 : vector<256x128xf32> to vector<256x128xbf16>
    %c0_8 = arith.constant 0 : index
    %c0_9 = arith.constant 0 : index
    %12 = vector.load %arg4[%c0_8, %c0_9] : memref<128x128xbf16, #tpu.memory_space<vmem>>, vector<128x128xbf16>
    %cst_10 = arith.constant dense<0.000000e+00> : vector<256x128xf32>
    %13 = tpu.matmul %11, %12, %cst_10 {dimension_numbers = #tpu.dot_dimension_numbers<[1], [0], [0], [1], [0, 0, 1, 1], [], []>} : vector<256x128xbf16>, vector<128x128xbf16>, vector<256x128xf32> -> vector<256x128xf32>
    %c0_11 = arith.constant 0 : index
    %c0_12 = arith.constant 0 : index
    %14 = vector.load %arg5[%c0_11, %c0_12] : memref<1x128xf32, #tpu.memory_space<vmem>>, vector<1x128xf32>
    %15 = vector.broadcast %14 : vector<1x128xf32> to vector<256x128xf32>
    %16 = arith.addf %13, %15 : vector<256x128xf32>
    %cst_13 = arith.constant 0.000000e+00 : f32
    %17 = vector.broadcast %cst_13 : f32 to vector<256x128xf32>
    %18 = arith.maximumf %16, %17 : vector<256x128xf32>
    %19 = arith.truncf %18 : vector<256x128xf32> to vector<256x128xbf16>
    %c0_14 = arith.constant 0 : index
    %c0_15 = arith.constant 0 : index
    %20 = vector.load %arg6[%c0_14, %c0_15] : memref<128x128xbf16, #tpu.memory_space<vmem>>, vector<128x128xbf16>
    %cst_16 = arith.constant dense<0.000000e+00> : vector<256x128xf32>
    %21 = tpu.matmul %19, %20, %cst_16 {dimension_numbers = #tpu.dot_dimension_numbers<[1], [0], [0], [1], [0, 0, 1, 1], [], []>} : vector<256x128xbf16>, vector<128x128xbf16>, vector<256x128xf32> -> vector<256x128xf32>
    %c0_17 = arith.constant 0 : index
    %c0_18 = arith.constant 0 : index
    %22 = vector.load %arg7[%c0_17, %c0_18] : memref<1x128xf32, #tpu.memory_space<vmem>>, vector<1x128xf32>
    %23 = vector.broadcast %22 : vector<1x128xf32> to vector<256x128xf32>
    %24 = arith.addf %21, %23 : vector<256x128xf32>
    %25 = vector.shape_cast %24 : vector<256x128xf32> to vector<8x32x128xf32>
    %c0_19 = arith.constant 0 : index
    %c0_20 = arith.constant 0 : index
    %c0_21 = arith.constant 0 : index
    %26 = vector.load %arg8[%c0_19, %c0_20, %c0_21] : memref<8x32x128xf32, #tpu.memory_space<vmem>>, vector<8x32x128xf32>
    tpu.vector_store %arg8[%c0_19, %c0_20, %c0_21], %25 {strides = array<i32>} : memref<8x32x128xf32, #tpu.memory_space<vmem>>, vector<8x32x128xf32>,
    return
  }
  func.func @transform_0(%arg0: i32) -> (i32, i32, i32) {
    %c0_i32 = arith.constant 0 : i32
    %c0_i32_0 = arith.constant 0 : i32
    %c0_i32_1 = arith.constant 0 : i32
    return %arg0, %c0_i32, %c0_i32_0 : i32, i32, i32
  }
  func.func @transform_1(%arg0: i32) -> (i32, i32) {
    %c0_i32 = arith.constant 0 : i32
    %c0_i32_0 = arith.constant 0 : i32
    %c0_i32_1 = arith.constant 0 : i32
    return %c0_i32, %c0_i32_0 : i32, i32
  }
  func.func @transform_2(%arg0: i32) -> (i32, i32) {
    %c0_i32 = arith.constant 0 : i32
    %c0_i32_0 = arith.constant 0 : i32
    %c0_i32_1 = arith.constant 0 : i32
    return %c0_i32, %c0_i32_0 : i32, i32
  }
  func.func @transform_3(%arg0: i32) -> (i32, i32) {
    %c0_i32 = arith.constant 0 : i32
    %c0_i32_0 = arith.constant 0 : i32
    %c0_i32_1 = arith.constant 0 : i32
    return %c0_i32, %c0_i32_0 : i32, i32
  }
  func.func @transform_4(%arg0: i32) -> (i32, i32) {
    %c0_i32 = arith.constant 0 : i32
    %c0_i32_0 = arith.constant 0 : i32
    %c0_i32_1 = arith.constant 0 : i32
    return %c0_i32, %c0_i32_0 : i32, i32
  }
  func.func @transform_5(%arg0: i32) -> (i32, i32) {
    %c0_i32 = arith.constant 0 : i32
    %c0_i32_0 = arith.constant 0 : i32
    %c0_i32_1 = arith.constant 0 : i32
    return %c0_i32, %c0_i32_0 : i32, i32
  }
  func.func @transform_6(%arg0: i32) -> (i32, i32) {
    %c0_i32 = arith.constant 0 : i32
    %c0_i32_0 = arith.constant 0 : i32
    %c0_i32_1 = arith.constant 0 : i32
    return %c0_i32, %c0_i32_0 : i32, i32
  }
  func.func @transform_7(%arg0: i32) -> (i32, i32, i32) {
    %c0_i32 = arith.constant 0 : i32
    %c0_i32_0 = arith.constant 0 : i32
    %c0_i32_1 = arith.constant 0 : i32
    return %arg0, %c0_i32, %c0_i32_0 : i32, i32, i32
  }
}

</mosaic_0001>

<llo_original>
// kernel: my_rnn_forward.2
$region0: #{my_rnn_forward.2}
  #allocation0 [shape = 'u32[]', space=smem, size = 0x4, offset = 0x4, fixed_abs, tag = 'smem constant byte address 0x4 - core index']
  #allocation1 [shape = 'u32[144,128]{1,0:T(1,128)}', space=vmem, size = 0x12000, scoped, tag = 'internal scratch']
  #allocation2 [shape = 'f32[16,128]{1,0:T(8,128)}', space=vmem, size = 0x2000, scoped, tag = 'scratch operand']
  #allocation3 [shape = 'f32[8,16,128]{2,1,0:T(8,128)}', space=vmem, size = 0x10000, scoped, tag = 'scratch operand']
  %s0 = inlined_call_operand.vmem [shape: s32[32,1], index: 0, kind: input, shape index: {}]
  %s1 = inlined_call_operand.vmem [shape: bf16[8,32,16], index: 1, kind: input, shape index: {}]
  %s2 = inlined_call_operand.vmem [shape: bf16[16,128], index: 2, kind: input, shape index: {}]
  %s3 = inlined_call_operand.vmem [shape: bf16[128,128], index: 3, kind: input, shape index: {}]
  %s4 = inlined_call_operand.vmem [shape: f32[1,128], index: 4, kind: input, shape index: {}]
  %s5 = inlined_call_operand.vmem [shape: bf16[8,32,128], index: 5, kind: output, shape index: {}]
  %s6 = sld [smem:[#allocation0]]
  $region135: #{my_rnn_forward.2} parent=0
    _
  %s8 = ssub.s32 1, %s6
  %s9 = scalar_select 0, %s8, %s6
  $region1: #{my_rnn_forward.2} parent=0
    #allocation4 [shape = 'u8[65536]{0}', space=vmem, size = 0x10000, scoped, tag = 'input window, operand 1']
    #allocation5 [shape = 'u8[65536]{0}', space=vmem, size = 0x10000, scoped, tag = 'output window, operand 0']
    loop: start=0, step=1, limit=4
    $region2: #{my_rnn_forward.2} parent=1 // loop_pre_header
      _
    $region3: #{my_rnn_forward.2} parent=1 // loop_header
      %s11 = sphi 0, %s15
      %p12 = scmp.ge.s32.totalorder %s11, 4
      %s18 = sphi 0, %s30
      %s19 = sphi 0, %s26
      %s20 = sphi 0, %s18
      %s21 = sphi 0, %s19
      %s22 = sphi 0, %s20
      %s23 = sphi 0, %s21
      %s33 = sphi 0, %s35
      %s36 = sphi 0, %s33
      %s37 = sphi 0, %s36
      %s53 = sphi 0, %s37
      %s61 = sphi 0, %s63
      %s64 = sphi 0, %s61
      %s65 = sphi 0, %s64
      %s81 = sphi 0, %s65
      %s85 = sphi 0, %s85
      %s87 = sphi 0, %s85
      %s88 = sphi 0, %s87
      %s102 = sphi 0, %s88
      %s106 = sphi 0, %s106
      %s108 = sphi 0, %s106
      %s109 = sphi 0, %s108
      %s123 = sphi 0, %s109
      %s127 = sphi 0, %s127
      %s129 = sphi 0, %s127
      %s130 = sphi 0, %s129
      %s144 = sphi 0, %s130
      %s152 = sphi 0, %s154
      %s155 = sphi 0, %s152
      %s156 = sphi 0, %s155
      %s172 = sphi 0, %s156
    $region4: #{my_rnn_forward.2} parent=1 // loop_header_branch
      %14 = sbr.rel (%p12) target = $region8
    $region5: #{my_rnn_forward.2} parent=1 // loop_body
      %s16 = ssub.s32 %s11, 1
      %s17 = ssub.s32 %s11, 2
      %s24 = sadd.s32 1, %s19
      %p25 = scmp.ge.s32.totalorder %s24, 1
      %s26 = scalar_select %p25, 0, %s24
      %s27 = sadd.s32 1, %s18
      %s28 = scalar_select %p25, %s27, %s18
      %p29 = scmp.ge.s32.totalorder %s28, 2
      %s30 = scalar_select %p29, 0, %s28
      %s31 = ssub.s32 %s18, %s30
      %p32 = scmp.eq.s32.totalorder %s31, 0
      %s34 = sadd.s32 %s33, 1
      %s35 = scalar_select %p32, %s33, %s34
      %p38 = pneg %p32
      %p39 = scmp.eq.s32.totalorder %s11, 1
      %p40 = por %p38, %p39
      %p41 = scmp.ne.s32.totalorder %s33, %s36
      %p42 = scmp.eq.s32.totalorder %s11, 0
      %p43 = por %p41, %p42
      %p44 = scmp.ne.s32.totalorder %s33, %s36
      %p45 = scmp.eq.s32.totalorder %s16, 1
      %p46 = por %p44, %p45
      %p47 = scmp.ne.s32.totalorder %s36, %s37
      %p48 = scmp.eq.s32.totalorder %s16, 0
      %p49 = por %p47, %p48
      %p50 = scmp.ne.s32.totalorder %s36, %s37
      %p51 = scmp.eq.s32.totalorder %s17, 1
      %p52 = por %p50, %p51
      %p54 = scmp.ne.s32.totalorder %s37, %s53
      %p55 = scmp.eq.s32.totalorder %s17, 0
      %p56 = por %p54, %p55
      %s57 = ssub.s32 %s19, %s26
      %s58 = ssub.s32 %s18, %s30
      %s59 = sor.u32 %s57, %s58
      %p60 = scmp.eq.s32.totalorder %s59, 0
      %s62 = sadd.s32 %s61, 1
      %s63 = scalar_select %p60, %s61, %s62
      %p66 = pneg %p60
      %p67 = scmp.eq.s32.totalorder %s11, 1
      %p68 = por %p66, %p67
      %p69 = scmp.ne.s32.totalorder %s61, %s64
      %p70 = scmp.eq.s32.totalorder %s11, 0
      %p71 = por %p69, %p70
      %p72 = scmp.ne.s32.totalorder %s61, %s64
      %p73 = scmp.eq.s32.totalorder %s16, 1
      %p74 = por %p72, %p73
      %p75 = scmp.ne.s32.totalorder %s64, %s65
      %p76 = scmp.eq.s32.totalorder %s16, 0
      %p77 = por %p75, %p76
      %p78 = scmp.ne.s32.totalorder %s64, %s65
      %p79 = scmp.eq.s32.totalorder %s17, 1
      %p80 = por %p78, %p79
      %p82 = scmp.ne.s32.totalorder %s65, %s81
      %p83 = scmp.eq.s32.totalorder %s17, 0
      %p84 = por %p82, %p83
      %s86 = sadd.s32 %s85, 1
      %p89 = scmp.eq.s32.totalorder %s11, 1
      %p90 = scmp.ne.s32.totalorder %s85, %s87
      %p91 = scmp.eq.s32.totalorder %s11, 0
      %p92 = por %p90, %p91
      %p93 = scmp.ne.s32.totalorder %s85, %s87
      %p94 = scmp.eq.s32.totalorder %s16, 1
      %p95 = por %p93, %p94
      %p96 = scmp.ne.s32.totalorder %s87, %s88
      %p97 = scmp.eq.s32.totalorder %s16, 0
      %p98 = por %p96, %p97
      %p99 = scmp.ne.s32.totalorder %s87, %s88
      %p100 = scmp.eq.s32.totalorder %s17, 1
      %p101 = por %p99, %p100
      %p103 = scmp.ne.s32.totalorder %s88, %s102
      %p104 = scmp.eq.s32.totalorder %s17, 0
      %p105 = por %p103, %p104
      %s107 = sadd.s32 %s106, 1
      %p110 = scmp.eq.s32.totalorder %s11, 1
      %p111 = scmp.ne.s32.totalorder %s106, %s108
      %p112 = scmp.eq.s32.totalorder %s11, 0
      %p113 = por %p111, %p112
      %p114 = scmp.ne.s32.totalorder %s106, %s108
      %p115 = scmp.eq.s32.totalorder %s16, 1
      %p116 = por %p114, %p115
      %p117 = scmp.ne.s32.totalorder %s108, %s109
      %p118 = scmp.eq.s32.totalorder %s16, 0
      %p119 = por %p117, %p118
      %p120 = scmp.ne.s32.totalorder %s108, %s109
      %p121 = scmp.eq.s32.totalorder %s17, 1
      %p122 = por %p120, %p121
      %p124 = scmp.ne.s32.totalorder %s109, %s123
      %p125 = scmp.eq.s32.totalorder %s17, 0
      %p126 = por %p124, %p125
      %s128 = sadd.s32 %s127, 1
      %p131 = scmp.eq.s32.totalorder %s11, 1
      %p132 = scmp.ne.s32.totalorder %s127, %s129
      %p133 = scmp.eq.s32.totalorder %s11, 0
      %p134 = por %p132, %p133
      %p135 = scmp.ne.s32.totalorder %s127, %s129
      %p136 = scmp.eq.s32.totalorder %s16, 1
      %p137 = por %p135, %p136
      %p138 = scmp.ne.s32.totalorder %s129, %s130
      %p139 = scmp.eq.s32.totalorder %s16, 0
      %p140 = por %p138, %p139
      %p141 = scmp.ne.s32.totalorder %s129, %s130
      %p142 = scmp.eq.s32.totalorder %s17, 1
      %p143 = por %p141, %p142
      %p145 = scmp.ne.s32.totalorder %s130, %s144
      %p146 = scmp.eq.s32.totalorder %s17, 0
      %p147 = por %p145, %p146
      %s148 = ssub.s32 %s19, %s26
      %s149 = ssub.s32 %s18, %s30
      %s150 = sor.u32 %s148, %s149
      %p151 = scmp.eq.s32.totalorder %s150, 0
      %s153 = sadd.s32 %s152, 1
      %s154 = scalar_select %p151, %s152, %s153
      %p157 = pneg %p151
      %p158 = scmp.eq.s32.totalorder %s11, 1
      %p159 = por %p157, %p158
      %p160 = scmp.ne.s32.totalorder %s152, %s155
      %p161 = scmp.eq.s32.totalorder %s11, 0
      %p162 = por %p160, %p161
      %p163 = scmp.ne.s32.totalorder %s152, %s155
      %p164 = scmp.eq.s32.totalorder %s16, 1
      %p165 = por %p163, %p164
      %p166 = scmp.ne.s32.totalorder %s155, %s156
      %p167 = scmp.eq.s32.totalorder %s16, 0
      %p168 = por %p166, %p167
      %p169 = scmp.ne.s32.totalorder %s155, %s156
      %p170 = scmp.eq.s32.totalorder %s17, 1
      %p171 = por %p169, %p170
      %p173 = scmp.ne.s32.totalorder %s156, %s172
      %p174 = scmp.eq.s32.totalorder %s17, 0
      %p175 = por %p173, %p174
      %p176 = scmp.le.s32.totalorder 1, %s11
      %p177 = scmp.lt.s32.totalorder %s11, 3
      %p178 = pnand %p176, %p177
      %p179 = pneg %p178
      // Predicated region
      $region9: #{my_rnn_forward.2} parent=5 // pred_check
        _
      $region10: #{my_rnn_forward.2} parent=5 // pred_check_branch
        %181 = sbr.rel (%p178) target = $region12
      $region11: #{my_rnn_forward.2} parent=5 // pred_region
        %s182 = ssub.s32 %s11, 1
        // Predicated region
        $region13: #{my_rnn_forward.2} parent=11 // pred_check
          %p183 = pneg %p98
        $region14: #{my_rnn_forward.2} parent=11 // pred_check_branch
          %185 = sbr.rel (%p183) target = $region16
        $region15: #{my_rnn_forward.2} parent=11 // pred_region
          _
        $region16: #{my_rnn_forward.2} parent=11 // pred_fallthru
          _
        // Predicated region
        $region17: #{my_rnn_forward.2} parent=11 // pred_check
          %p186 = pneg %p119
        $region18: #{my_rnn_forward.2} parent=11 // pred_check_branch
          %188 = sbr.rel (%p186) target = $region20
        $region19: #{my_rnn_forward.2} parent=11 // pred_region
          _
        $region20: #{my_rnn_forward.2} parent=11 // pred_fallthru
          _
        // Predicated region
        $region21: #{my_rnn_forward.2} parent=11 // pred_check
          %p189 = pneg %p140
        $region22: #{my_rnn_forward.2} parent=11 // pred_check_branch
          %191 = sbr.rel (%p189) target = $region24
        $region23: #{my_rnn_forward.2} parent=11 // pred_region
          _
        $region24: #{my_rnn_forward.2} parent=11 // pred_fallthru
          _
      $region12: #{my_rnn_forward.2} parent=5 // pred_fallthru
        _
      %p192 = scmp.lt.s32.totalorder %s11, 2
      // Predicated region
      $region25: #{my_rnn_forward.2} parent=5 // pred_check
        %p193 = pneg %p192
      $region26: #{my_rnn_forward.2} parent=5 // pred_check_branch
        %195 = sbr.rel (%p193) target = $region28
      $region27: #{my_rnn_forward.2} parent=5 // pred_region
        // Predicated region
        $region29: #{my_rnn_forward.2} parent=27 // pred_check
          %p196 = pneg %p43
        $region30: #{my_rnn_forward.2} parent=27 // pred_check_branch
          %198 = sbr.rel (%p196) target = $region32
        $region31: #{my_rnn_forward.2} parent=27 // pred_region
          %s199 = smul.u32 2, %s18
          %p200 = scmp.lt.s32.totalorder %s199, 3
          %s201 = scalar_select %p200, %s199, 3
          %s202 = smul.addr %s201, 8
          %s203 = scalar_lea.vmem %s0, %s202
          %s204 = smul.u32 2, %s18
        $region32: #{my_rnn_forward.2} parent=27 // pred_fallthru
          _
        // Predicated region
        $region33: #{my_rnn_forward.2} parent=27 // pred_check
          %p205 = pneg %p71
        $region34: #{my_rnn_forward.2} parent=27 // pred_check_branch
          %207 = sbr.rel (%p205) target = $region36
        $region35: #{my_rnn_forward.2} parent=27 // pred_region
          %s208 = sand.u32 %s61, 1
          %s209 = sand.u32 %s61, 1
          %s210 = smul.addr %s209, 64
          %s211 = scalar_lea.vmem [#allocation4], %s210
          %s212 = smul.u32 8, %s19
          %s213 = smul.u32 2, %s18
          %s214 = smul.addr %s212, 4
          %s215 = sadd.s32 %s213, %s214
          %s216 = smul.addr %s215, 4
          %s217 = scalar_lea.vmem %s1, %s216
          // Predicated region
          $region37: #{my_rnn_forward.2} parent=35 // pred_check
            _
          $region38: #{my_rnn_forward.2} parent=35 // pred_check_branch
            %219 = sbr.rel (0) target = $region40
          $region39: #{my_rnn_forward.2} parent=35 // pred_region
            // Predicated region
            $region41: #{my_rnn_forward.2} parent=39 // pred_check
              _
            $region42: #{my_rnn_forward.2} parent=39 // pred_check_branch
              %221 = sbr.rel target = $region44
            $region43: #{my_rnn_forward.2} parent=39 // pred_region
              // Predicated region
              $region56: #{my_rnn_forward.2} parent=43 // pred_check
                _
              $region57: #{my_rnn_forward.2} parent=43 // pred_check_branch
                %266 = sbr.rel (0) target = $region59
              $region58: #{my_rnn_forward.2} parent=43 // pred_region
                loop: start=0, step=1, limit=1
                $region60: #{my_rnn_forward.2} parent=58 // loop_pre_header
                  _
                $region61: #{my_rnn_forward.2} parent=58 // loop_header
                  %s268 = sphi 0, %s272
                  %p269 = scmp.ge.s32.totalorder %s268, 1
                  %s273 = sphi %s217, %s217
                  %s274 = sphi %s211, %s211
                $region62: #{my_rnn_forward.2} parent=58 // loop_header_branch
                  %271 = sbr.rel (%p269) target = $region66
                $region63: #{my_rnn_forward.2} parent=58 // loop_body
                  _
                $region64: #{my_rnn_forward.2} parent=58 // loop_footer
                  %s272 = sadd.s32 1, %s268
                $region65: #{my_rnn_forward.2} parent=58 // loop_footer_branch
                  %267 = sbr.rel target = $region61
                $region66: #{my_rnn_forward.2} parent=58 // loop_exit
                  _
                loop: start=0, step=1, limit=1
                $region67: #{my_rnn_forward.2} parent=58 // loop_pre_header
                  _
                $region68: #{my_rnn_forward.2} parent=58 // loop_header
                  %s277 = sphi 0, %s281
                  %p278 = scmp.ge.s32.totalorder %s277, 1
                  %s282 = sphi %s217, %s217
                  %s283 = sphi %s211, %s211
                $region69: #{my_rnn_forward.2} parent=58 // loop_header_branch
                  %280 = sbr.rel (%p278) target = $region73
                $region70: #{my_rnn_forward.2} parent=58 // loop_body
                  %v284 = vld [vmem:[%s282] sm:$0xf]
                  %285 = vst [vmem:[%s283] sm:$0xf] %v284
                  %v286 = vld [vmem:[%s282 + $0x4] sm:$0xf]
                  %287 = vst [vmem:[%s283 + $0x4] sm:$0xf] %v286
                  %v288 = vld [vmem:[%s282 + $0x10] sm:$0xf]
                  %289 = vst [vmem:[%s283 + $0x8] sm:$0xf] %v288
                  %v290 = vld [vmem:[%s282 + $0x14] sm:$0xf]
                  %291 = vst [vmem:[%s283 + $0xc] sm:$0xf] %v290
                  %v292 = vld [vmem:[%s282 + $0x20] sm:$0xf]
                  %293 = vst [vmem:[%s283 + $0x10] sm:$0xf] %v292
                  %v294 = vld [vmem:[%s282 + $0x24] sm:$0xf]
                  %295 = vst [vmem:[%s283 + $0x14] sm:$0xf] %v294
                  %v296 = vld [vmem:[%s282 + $0x30] sm:$0xf]
                  %297 = vst [vmem:[%s283 + $0x18] sm:$0xf] %v296
                  %v298 = vld [vmem:[%s282 + $0x34] sm:$0xf]
                  %299 = vst [vmem:[%s283 + $0x1c] sm:$0xf] %v298
                  %v300 = vld [vmem:[%s282 + $0x40] sm:$0xf]
                  %301 = vst [vmem:[%s283 + $0x20] sm:$0xf] %v300
                  %v302 = vld [vmem:[%s282 + $0x44] sm:$0xf]
                  %303 = vst [vmem:[%s283 + $0x24] sm:$0xf] %v302
                  %v304 = vld [vmem:[%s282 + $0x50] sm:$0xf]
                  %305 = vst [vmem:[%s283 + $0x28] sm:$0xf] %v304
                  %v306 = vld [vmem:[%s282 + $0x54] sm:$0xf]
                  %307 = vst [vmem:[%s283 + $0x2c] sm:$0xf] %v306
                  %v308 = vld [vmem:[%s282 + $0x60] sm:$0xf]
                  %309 = vst [vmem:[%s283 + $0x30] sm:$0xf] %v308
                  %v310 = vld [vmem:[%s282 + $0x64] sm:$0xf]
                  %311 = vst [vmem:[%s283 + $0x34] sm:$0xf] %v310
                  %v312 = vld [vmem:[%s282 + $0x70] sm:$0xf]
                  %313 = vst [vmem:[%s283 + $0x38] sm:$0xf] %v312
                  %v314 = vld [vmem:[%s282 + $0x74] sm:$0xf]
                  %315 = vst [vmem:[%s283 + $0x3c] sm:$0xf] %v314
                $region71: #{my_rnn_forward.2} parent=58 // loop_footer
                  %s281 = sadd.s32 1, %s277
                $region72: #{my_rnn_forward.2} parent=58 // loop_footer_branch
                  %276 = sbr.rel target = $region68
                $region73: #{my_rnn_forward.2} parent=58 // loop_exit
                  _
              $region59: #{my_rnn_forward.2} parent=43 // pred_fallthru
                _
            $region44: #{my_rnn_forward.2} parent=39 // pred_fallthru
              _
            // Predicated region
            $region45: #{my_rnn_forward.2} parent=39 // pred_check
              _
            $region46: #{my_rnn_forward.2} parent=39 // pred_check_branch
              %223 = sbr.rel (0) target = $region48
            $region47: #{my_rnn_forward.2} parent=39 // pred_region
              loop: start=0, step=1, limit=1
              $region49: #{my_rnn_forward.2} parent=47 // loop_pre_header
                _
              $region50: #{my_rnn_forward.2} parent=47 // loop_header
                %s226 = sphi 0, %s230
                %p227 = scmp.ge.s32.totalorder %s226, 1
                %s231 = sphi %s217, %s217
                %s232 = sphi %s211, %s211
              $region51: #{my_rnn_forward.2} parent=47 // loop_header_branch
                %229 = sbr.rel (%p227) target = $region55
              $region52: #{my_rnn_forward.2} parent=47 // loop_body
                %v233 = vld [vmem:[%s231] sm:$0xf]
                %234 = vst [vmem:[%s232] sm:$0xf] %v233
                %v235 = vld [vmem:[%s231 + $0x4] sm:$0xf]
                %236 = vst [vmem:[%s232 + $0x4] sm:$0xf] %v235
                %v237 = vld [vmem:[%s231 + $0x10] sm:$0xf]
                %238 = vst [vmem:[%s232 + $0x8] sm:$0xf] %v237
                %v239 = vld [vmem:[%s231 + $0x14] sm:$0xf]
                %240 = vst [vmem:[%s232 + $0xc] sm:$0xf] %v239
                %v241 = vld [vmem:[%s231 + $0x20] sm:$0xf]
                %242 = vst [vmem:[%s232 + $0x10] sm:$0xf] %v241
                %v243 = vld [vmem:[%s231 + $0x24] sm:$0xf]
                %244 = vst [vmem:[%s232 + $0x14] sm:$0xf] %v243
                %v245 = vld [vmem:[%s231 + $0x30] sm:$0xf]
                %246 = vst [vmem:[%s232 + $0x18] sm:$0xf] %v245
                %v247 = vld [vmem:[%s231 + $0x34] sm:$0xf]
                %248 = vst [vmem:[%s232 + $0x1c] sm:$0xf] %v247
                %v249 = vld [vmem:[%s231 + $0x40] sm:$0xf]
                %250 = vst [vmem:[%s232 + $0x20] sm:$0xf] %v249
                %v251 = vld [vmem:[%s231 + $0x44] sm:$0xf]
                %252 = vst [vmem:[%s232 + $0x24] sm:$0xf] %v251
                %v253 = vld [vmem:[%s231 + $0x50] sm:$0xf]
                %254 = vst [vmem:[%s232 + $0x28] sm:$0xf] %v253
                %v255 = vld [vmem:[%s231 + $0x54] sm:$0xf]
                %256 = vst [vmem:[%s232 + $0x2c] sm:$0xf] %v255
                %v257 = vld [vmem:[%s231 + $0x60] sm:$0xf]
                %258 = vst [vmem:[%s232 + $0x30] sm:$0xf] %v257
                %v259 = vld [vmem:[%s231 + $0x64] sm:$0xf]
                %260 = vst [vmem:[%s232 + $0x34] sm:$0xf] %v259
                %v261 = vld [vmem:[%s231 + $0x70] sm:$0xf]
                %262 = vst [vmem:[%s232 + $0x38] sm:$0xf] %v261
                %v263 = vld [vmem:[%s231 + $0x74] sm:$0xf]
                %264 = vst [vmem:[%s232 + $0x3c] sm:$0xf] %v263
              $region53: #{my_rnn_forward.2} parent=47 // loop_footer
                %s230 = sadd.s32 1, %s226
              $region54: #{my_rnn_forward.2} parent=47 // loop_footer_branch
                %225 = sbr.rel target = $region50
              $region55: #{my_rnn_forward.2} parent=47 // loop_exit
                _
            $region48: #{my_rnn_forward.2} parent=39 // pred_fallthru
              _
          $region40: #{my_rnn_forward.2} parent=35 // pred_fallthru
            _
          %316 = vnop
        $region36: #{my_rnn_forward.2} parent=27 // pred_fallthru
          _
      $region28: #{my_rnn_forward.2} parent=5 // pred_fallthru
        _
      %p317 = scmp.le.s32.totalorder 1, %s11
      %p318 = scmp.lt.s32.totalorder %s11, 3
      %p319 = pnand %p317, %p318
      %p320 = pneg %p319
      // Predicated region
      $region74: #{my_rnn_forward.2} parent=5 // pred_check
        _
      $region75: #{my_rnn_forward.2} parent=5 // pred_check_branch
        %322 = sbr.rel (%p319) target = $region77
      $region76: #{my_rnn_forward.2} parent=5 // pred_region
        %s323 = ssub.s32 %s11, 1
        %s324 = sand.u32 %s64, 1
        %s325 = sand.u32 %s64, 1
        %s326 = smul.addr %s325, 64
        %s327 = scalar_lea.vmem [#allocation4], %s326
        // Predicated region
        $region78: #{my_rnn_forward.2} parent=76 // pred_check
          %p328 = pneg %p77
        $region79: #{my_rnn_forward.2} parent=76 // pred_check_branch
          %330 = sbr.rel (%p328) target = $region81
        $region80: #{my_rnn_forward.2} parent=76 // pred_region
          _
        $region81: #{my_rnn_forward.2} parent=76 // pred_fallthru
          _
        %s331 = smul.u32 2, %s20
        %p332 = scmp.lt.s32.totalorder %s331, 3
        %s333 = scalar_select %p332, %s331, 3
        %s334 = smul.addr %s333, 8
        %s335 = scalar_lea.vmem %s0, %s334
        %p336 = pneg %p49
        %p337 = pneg %p46
        %s338 = sand.u32 %s64, 1
        %s339 = sand.u32 %s64, 1
        %s340 = smul.addr %s339, 64
        %s341 = scalar_lea.vmem [#allocation4], %s340
        %p342 = pneg %p77
        %p343 = pneg %p74
        %p344 = pneg %p98
        %p345 = pneg %p95
        %p346 = pneg %p119
        %p347 = pneg %p116
        %p348 = pneg %p140
        %p349 = pneg %p137
        %p350 = pneg %p168
        %p351 = pneg %p165
        %s352 = sand.u32 %s155, 1
        %s353 = sand.u32 %s155, 1
        %s354 = smul.addr %s353, 64
        %s355 = scalar_lea.vmem [#allocation5], %s354
        %s356 = smul.u32 2, %s20
        %p357 = scmp.lt.s32.totalorder %s356, 3
        %s358 = scalar_select %p357, %s356, 3
        %s359 = smul.addr %s358, 8
        %s360 = scalar_lea.vmem %s0, %s359
        %s361 = smul.u32 2, %s20
        %s362 = smul.u32 8, %s21
        %s363 = smul.u32 2, %s20
        %s364 = smul.u32 8, %s21
        %s365 = smul.u32 2, %s20
        %p367 = scmp.eq.s32.totalorder %s21, 0
        // Predicated region
        $region82: #{my_rnn_forward.2} parent=76 // pred_check
          %p368 = pneg %p367
        $region83: #{my_rnn_forward.2} parent=76 // pred_check_branch
          %370 = sbr.rel (%p368) target = $region85
        $region84: #{my_rnn_forward.2} parent=76 // pred_region
          %371 = vst [vmem:[#allocation2] sm:$0xff] 0.0
          %372 = vst [vmem:[#allocation2 + $0x8] sm:$0xff] 0.0
        $region85: #{my_rnn_forward.2} parent=76 // pred_fallthru
          _
        %v373 = vld [vmem:[%s327] sm:$0xf]
        %v374 = vld [vmem:[%s327 + $0x4] sm:$0xf]
        %v375 = vld [vmem:[%s327 + $0x8] sm:$0xf]
        %v376 = vld [vmem:[%s327 + $0xc] sm:$0xf]
        %v377 = vld [vmem:[%s327 + $0x10] sm:$0xf]
        %v378 = vld [vmem:[%s327 + $0x14] sm:$0xf]
        %v379 = vld [vmem:[%s327 + $0x18] sm:$0xf]
        %v380 = vld [vmem:[%s327 + $0x1c] sm:$0xf]
        %v381 = vld [vmem:[%s327 + $0x20] sm:$0xf]
        %v382 = vld [vmem:[%s327 + $0x24] sm:$0xf]
        %v383 = vld [vmem:[%s327 + $0x28] sm:$0xf]
        %v384 = vld [vmem:[%s327 + $0x2c] sm:$0xf]
        %v385 = vld [vmem:[%s327 + $0x30] sm:$0xf]
        %v386 = vld [vmem:[%s327 + $0x34] sm:$0xf]
        %v387 = vld [vmem:[%s327 + $0x38] sm:$0xf]
        %v388 = vld [vmem:[%s327 + $0x3c] sm:$0xf]
        %v389 = vld [vmem:[%s2] sm:$0xf]
        %v390 = vld [vmem:[%s2 + $0x4] sm:$0xf]
        %v391 = vld [vmem:[%s4] sm:$0x1]
        %v393 = vlaneseq
        %v394 = vshrl.u32 %v393, 7
        %v395 = vsub.s32 0, %v394
        %v396 = vrot.slane %v391, %v395
        %v414 = vunpack.c.l.b16 %v373
        %v415 = vunpack.c.l.b16 %v374
        %v416 = vunpack.c.l.b16 %v375
        %v417 = vunpack.c.l.b16 %v376
        %v418 = vunpack.c.l.b16 %v377
        %v419 = vunpack.c.l.b16 %v378
        %v420 = vunpack.c.l.b16 %v379
        %v421 = vunpack.c.l.b16 %v380
        %v422 = vunpack.c.l.b16 %v381
        %v423 = vunpack.c.l.b16 %v382
        %v424 = vunpack.c.l.b16 %v383
        %v425 = vunpack.c.l.b16 %v384
        %v426 = vunpack.c.l.b16 %v385
        %v427 = vunpack.c.l.b16 %v386
        %v428 = vunpack.c.l.b16 %v387
        %v429 = vunpack.c.l.b16 %v388
        %v430 = vpack.c.b16 %v415, %v414
        %v431 = vpack.c.b16 %v417, %v416
        %v432 = vpack.c.b16 %v419, %v418
        %v433 = vpack.c.b16 %v421, %v420
        %v434 = vpack.c.b16 %v423, %v422
        %v435 = vpack.c.b16 %v425, %v424
        %v436 = vpack.c.b16 %v427, %v426
        %v437 = vpack.c.b16 %v429, %v428
        %v440 = vunpack.c.l.b16 %v389
        %v441 = vunpack.c.l.b16 %v390
        %v442 = vpack.c.b16 %v441, %v440
        %vm444 = vcmask 130048
        %v446 = vsel %vm444, %v430, 0
        %v449 = vsel %vm444, %v431, 0
        %v452 = vsel %vm444, %v432, 0
        %v455 = vsel %vm444, %v433, 0
        %v458 = vsel %vm444, %v434, 0
        %v461 = vsel %vm444, %v435, 0
        %v464 = vsel %vm444, %v436, 0
        %v467 = vsel %vm444, %v437, 0
        %469 = vmatprep.subr.bf16.mxu0 0
        %470 = vmatpush1.bf16.msra.mxu0 %v442
        %471 = vmatprep.subr.bf16.mxu0 0
        %472 = vmatpush1.bf16.msra.mxu0 0
        %473 = vmatprep.subr.bf16.mxu0 0
        %474 = vmatpush1.bf16.msra.mxu0 0
        %475 = vmatprep.subr.bf16.mxu0 0
        %476 = vmatpush1.bf16.msra.mxu0 0
        %477 = vmatprep.subr.bf16.mxu0 0
        %478 = vmatpush1.bf16.msra.mxu0 0
        %479 = vmatprep.subr.bf16.mxu0 0
        %480 = vmatpush1.bf16.msra.mxu0 0
        %481 = vmatprep.subr.bf16.mxu0 0
        %482 = vmatpush1.bf16.msra.mxu0 0
        %483 = vmatprep.subr.bf16.mxu0 0
        %484 = vmatpush1.bf16.msra.mxu0 0
        %485 = vmatprep.subr.bf16.mxu0 0
        %486 = vmatpush1.bf16.msra.mxu0 0
        %487 = vmatprep.subr.bf16.mxu0 0
        %488 = vmatpush1.bf16.msra.mxu0 0
        %489 = vmatprep.subr.bf16.mxu0 0
        %490 = vmatpush1.bf16.msra.mxu0 0
        %491 = vmatprep.subr.bf16.mxu0 0
        %492 = vmatpush1.bf16.msra.mxu0 0
        %493 = vmatprep.subr.bf16.mxu0 0
        %494 = vmatpush1.bf16.msra.mxu0 0
        %495 = vmatprep.subr.bf16.mxu0 0
        %496 = vmatpush1.bf16.msra.mxu0 0
        %497 = vmatprep.subr.bf16.mxu0 0
        %498 = vmatpush1.bf16.msra.mxu0 0
        %499 = vmatprep.subr.bf16.mxu0 0
        %500 = vmatpush1.bf16.msra.mxu0 0
        %501 = vmatprep.mubr.bf16.mxu0 0
        %502 = vmatmul.mubr.bf16.gmra.mrb[0].mxu0 %v446
        %v503 = vpop.f32.mrb[0].mxu0
        %v504 = vadd.f32 %v396, %v503
        %v505 = vpop.f32.mrb[0].mxu0
        %v506 = vpop.f32.mrb[0].mxu0
        %v507 = vadd.f32 %v396, %v506
        %v508 = vpop.f32.mrb[0].mxu0
        %509 = vmatprep.mubr.bf16.mxu0 0
        %510 = vmatmul.mubr.bf16.gmra.mrb[0].mxu0 %v449
        %v511 = vpop.f32.mrb[0].mxu0
        %v512 = vadd.f32 %v396, %v511
        %v513 = vpop.f32.mrb[0].mxu0
        %v514 = vpop.f32.mrb[0].mxu0
        %v515 = vadd.f32 %v396, %v514
        %v516 = vpop.f32.mrb[0].mxu0
        %517 = vmatprep.mubr.bf16.mxu0 0
        %518 = vmatmul.mubr.bf16.gmra.mrb[0].mxu0 %v452
        %v519 = vpop.f32.mrb[0].mxu0
        %v520 = vadd.f32 %v396, %v519
        %v521 = vpop.f32.mrb[0].mxu0
        %v522 = vpop.f32.mrb[0].mxu0
        %v523 = vadd.f32 %v396, %v522
        %v524 = vpop.f32.mrb[0].mxu0
        %525 = vmatprep.mubr.bf16.mxu0 0
        %526 = vmatmul.mubr.bf16.gmra.mrb[0].mxu0 %v455
        %v527 = vpop.f32.mrb[0].mxu0
        %v528 = vadd.f32 %v396, %v527
        %v529 = vpop.f32.mrb[0].mxu0
        %v530 = vpop.f32.mrb[0].mxu0
        %v531 = vadd.f32 %v396, %v530
        %v532 = vpop.f32.mrb[0].mxu0
        %533 = vmatprep.mubr.bf16.mxu0 0
        %534 = vmatmul.mubr.bf16.gmra.mrb[0].mxu0 %v458
        %v535 = vpop.f32.mrb[0].mxu0
        %v536 = vadd.f32 %v396, %v535
        %v537 = vpop.f32.mrb[0].mxu0
        %v538 = vpop.f32.mrb[0].mxu0
        %v539 = vadd.f32 %v396, %v538
        %v540 = vpop.f32.mrb[0].mxu0
        %541 = vmatprep.mubr.bf16.mxu0 0
        %542 = vmatmul.mubr.bf16.gmra.mrb[0].mxu0 %v461
        %v543 = vpop.f32.mrb[0].mxu0
        %v544 = vadd.f32 %v396, %v543
        %v545 = vpop.f32.mrb[0].mxu0
        %v546 = vpop.f32.mrb[0].mxu0
        %v547 = vadd.f32 %v396, %v546
        %v548 = vpop.f32.mrb[0].mxu0
        %549 = vmatprep.mubr.bf16.mxu0 0
        %550 = vmatmul.mubr.bf16.gmra.mrb[0].mxu0 %v464
        %v551 = vpop.f32.mrb[0].mxu0
        %v552 = vadd.f32 %v396, %v551
        %v553 = vpop.f32.mrb[0].mxu0
        %v554 = vpop.f32.mrb[0].mxu0
        %v555 = vadd.f32 %v396, %v554
        %v556 = vpop.f32.mrb[0].mxu0
        %557 = vmatprep.mubr.bf16.mxu0 0
        %558 = vmatmul.mubr.bf16.gmra.mrb[0].mxu0 %v467
        %v559 = vpop.f32.mrb[0].mxu0
        %v560 = vadd.f32 %v396, %v559
        %v561 = vpop.f32.mrb[0].mxu0
        %v562 = vpop.f32.mrb[0].mxu0
        %v563 = vadd.f32 %v396, %v562
        %v564 = vpop.f32.mrb[0].mxu0
        %565 = vdwg.mxu0
        %566 = vst [vmem:[#allocation3] sm:$0xff] %v504
        %567 = vst [vmem:[#allocation3 + $0x8] sm:$0xff] %v507
        %568 = vst [vmem:[#allocation3 + $0x10] sm:$0xff] %v512
        %569 = vst [vmem:[#allocation3 + $0x18] sm:$0xff] %v515
        %570 = vst [vmem:[#allocation3 + $0x20] sm:$0xff] %v520
        %571 = vst [vmem:[#allocation3 + $0x28] sm:$0xff] %v523
        %572 = vst [vmem:[#allocation3 + $0x30] sm:$0xff] %v528
        %573 = vst [vmem:[#allocation3 + $0x38] sm:$0xff] %v531
        %574 = vst [vmem:[#allocation3 + $0x40] sm:$0xff] %v536
        %575 = vst [vmem:[#allocation3 + $0x48] sm:$0xff] %v539
        %576 = vst [vmem:[#allocation3 + $0x50] sm:$0xff] %v544
        %577 = vst [vmem:[#allocation3 + $0x58] sm:$0xff] %v547
        %578 = vst [vmem:[#allocation3 + $0x60] sm:$0xff] %v552
        %579 = vst [vmem:[#allocation3 + $0x68] sm:$0xff] %v555
        %580 = vst [vmem:[#allocation3 + $0x70] sm:$0xff] %v560
        %581 = vst [vmem:[#allocation3 + $0x78] sm:$0xff] %v563
        %v582 = vld [vmem:[%s3] sm:$0xf]
        %v583 = vld [vmem:[%s3 + $0x4] sm:$0xf]
        %v584 = vld [vmem:[%s3 + $0x8] sm:$0xf]
        %v585 = vld [vmem:[%s3 + $0xc] sm:$0xf]
        %v586 = vld [vmem:[%s3 + $0x10] sm:$0xf]
        %v587 = vld [vmem:[%s3 + $0x14] sm:$0xf]
        %v588 = vld [vmem:[%s3 + $0x18] sm:$0xf]
        %v589 = vld [vmem:[%s3 + $0x1c] sm:$0xf]
        %v590 = vld [vmem:[%s3 + $0x20] sm:$0xf]
        %v591 = vld [vmem:[%s3 + $0x24] sm:$0xf]
        %v592 = vld [vmem:[%s3 + $0x28] sm:$0xf]
        %v593 = vld [vmem:[%s3 + $0x2c] sm:$0xf]
        %v594 = vld [vmem:[%s3 + $0x30] sm:$0xf]
        %v595 = vld [vmem:[%s3 + $0x34] sm:$0xf]
        %v596 = vld [vmem:[%s3 + $0x38] sm:$0xf]
        %v597 = vld [vmem:[%s3 + $0x3c] sm:$0xf]
        %v598 = vld [vmem:[%s360] sm:$0xff]
        %v599 = vld [vmem:[%s360 + $0x8] sm:$0xff]
        %s600 = smul.u32 %s21, 8
        %v601 = vld [vmem:[#allocation2] sm:$0xff]
        %v602 = vld [vmem:[#allocation2 + $0x8] sm:$0xff]
        %v603 = vld [vmem:[#allocation3] sm:$0xff]
        %v604 = vld [vmem:[#allocation3 + $0x8] sm:$0xff]
        %v605 = vpack.c.bf16 %v602, %v601
        %v622 = vunpack.c.l.b16 %v582
        %v623 = vunpack.c.l.b16 %v583
        %v624 = vunpack.c.l.b16 %v584
        %v625 = vunpack.c.l.b16 %v585
        %v626 = vunpack.c.l.b16 %v586
        %v627 = vunpack.c.l.b16 %v587
        %v628 = vunpack.c.l.b16 %v588
        %v629 = vunpack.c.l.b16 %v589
        %v630 = vunpack.c.l.b16 %v590
        %v631 = vunpack.c.l.b16 %v591
        %v632 = vunpack.c.l.b16 %v592
        %v633 = vunpack.c.l.b16 %v593
        %v634 = vunpack.c.l.b16 %v594
        %v635 = vunpack.c.l.b16 %v595
        %v636 = vunpack.c.l.b16 %v596
        %v637 = vunpack.c.l.b16 %v597
        %v638 = vpack.c.b16 %v623, %v622
        %v639 = vpack.c.b16 %v625, %v624
        %v640 = vpack.c.b16 %v627, %v626
        %v641 = vpack.c.b16 %v629, %v628
        %v642 = vpack.c.b16 %v631, %v630
        %v643 = vpack.c.b16 %v633, %v632
        %v644 = vpack.c.b16 %v635, %v634
        %v645 = vpack.c.b16 %v637, %v636
        %654 = vmatprep.subr.bf16.mxu0 0
        %655 = vmatpush1.bf16.msra.mxu0 %v638
        %656 = vmatprep.subr.bf16.mxu0 0
        %657 = vmatpush1.bf16.msra.mxu0 %v639
        %658 = vmatprep.subr.bf16.mxu0 0
        %659 = vmatpush1.bf16.msra.mxu0 %v640
        %660 = vmatprep.subr.bf16.mxu0 0
        %661 = vmatpush1.bf16.msra.mxu0 %v641
        %662 = vmatprep.subr.bf16.mxu0 0
        %663 = vmatpush1.bf16.msra.mxu0 %v642
        %664 = vmatprep.subr.bf16.mxu0 0
        %665 = vmatpush1.bf16.msra.mxu0 %v643
        %666 = vmatprep.subr.bf16.mxu0 0
        %667 = vmatpush1.bf16.msra.mxu0 %v644
        %668 = vmatprep.subr.bf16.mxu0 0
        %669 = vmatpush1.bf16.msra.mxu0 %v645
        %670 = vmatprep.subr.bf16.mxu0 0
        %671 = vmatpush1.bf16.msra.mxu0 0
        %672 = vmatprep.subr.bf16.mxu0 0
        %673 = vmatpush1.bf16.msra.mxu0 0
        %674 = vmatprep.subr.bf16.mxu0 0
        %675 = vmatpush1.bf16.msra.mxu0 0
        %676 = vmatprep.subr.bf16.mxu0 0
        %677 = vmatpush1.bf16.msra.mxu0 0
        %678 = vmatprep.subr.bf16.mxu0 0
        %679 = vmatpush1.bf16.msra.mxu0 0
        %680 = vmatprep.subr.bf16.mxu0 0
        %681 = vmatpush1.bf16.msra.mxu0 0
        %682 = vmatprep.subr.bf16.mxu0 0
        %683 = vmatpush1.bf16.msra.mxu0 0
        %684 = vmatprep.subr.bf16.mxu0 0
        %685 = vmatpush1.bf16.msra.mxu0 0
        %686 = vmatprep.mubr.bf16.mxu0 0
        %687 = vmatmul.mubr.bf16.gmra.mrb[0].mxu0 %v605
        %v688 = vpop.f32.mrb[0].mxu0
        %v689 = vadd.f32 0.0, %v688
        %v690 = vpop.f32.mrb[0].mxu0
        %v691 = vpop.f32.mrb[0].mxu0
        %v692 = vadd.f32 0.0, %v691
        %v693 = vpop.f32.mrb[0].mxu0
        %694 = vdwg.mxu0
        %v695 = vadd.f32 %v603, %v689
        %v696 = vadd.f32 %v604, %v692
        %v697 = vtanh.pop %v695
        %v698 = vtanh.pop %v696
        %v699 = vstv %s600
        %vm700 = vcmp.gt.s32.totalorder %v598, %v699
        %vm701 = vcmp.gt.s32.totalorder %v599, %v699
        %v702 = vsel %vm700, 1, 0
        %v703 = vsel %vm701, 1, 0
        %704 = vset.pattern.permute.xlu0 0
        %705 = vperm.xlu0 %704, %v702
        %v706 = vpop.permute.xlu0 %705
        %707 = vset.pattern.permute.xlu0 0
        %708 = vperm.xlu0 %707, %v703
        %v709 = vpop.permute.xlu0 %708
        %vm710 = vcmp.eq.s32.totalorder %v706, 1
        %vm711 = vcmp.eq.s32.totalorder %v709, 1
        %v712 = vsel %vm710, %v697, 0.0
        %v713 = vsel %vm711, %v698, 0.0
        %v714 = vpack.c.bf16 %v713, %v712
        %v716 = vunpack.c.l.b16 %v714
        %v717 = vunpack.c.h.b16 %v714
        %v718 = vpack.c.b16 %v716, %v716
        %v719 = vpack.c.b16 %v717, %v717
        %722 = vst [vmem:[%s355] sm:$0xf] %v718
        %723 = vst [vmem:[%s355 + $0x4] sm:$0xf] %v719
        %v724 = vsel %vm710, %v697, %v601
        %v725 = vsel %vm711, %v698, %v602
        %s726 = scalar_lea.vmem [#allocation3], 16
        %v727 = vld [vmem:[%s726] sm:$0xff]
        %v728 = vld [vmem:[%s726 + $0x8] sm:$0xff]
        %v729 = vpack.c.bf16 %v725, %v724
        %730 = vmatprep.subr.bf16.mxu0 0
        %731 = vmatpush1.bf16.msra.mxu0 %v638
        %732 = vmatprep.subr.bf16.mxu0 0
        %733 = vmatpush1.bf16.msra.mxu0 %v639
        %734 = vmatprep.subr.bf16.mxu0 0
        %735 = vmatpush1.bf16.msra.mxu0 %v640
        %736 = vmatprep.subr.bf16.mxu0 0
        %737 = vmatpush1.bf16.msra.mxu0 %v641
        %738 = vmatprep.subr.bf16.mxu0 0
        %739 = vmatpush1.bf16.msra.mxu0 %v642
        %740 = vmatprep.subr.bf16.mxu0 0
        %741 = vmatpush1.bf16.msra.mxu0 %v643
        %742 = vmatprep.subr.bf16.mxu0 0
        %743 = vmatpush1.bf16.msra.mxu0 %v644
        %744 = vmatprep.subr.bf16.mxu0 0
        %745 = vmatpush1.bf16.msra.mxu0 %v645
        %746 = vmatprep.subr.bf16.mxu0 0
        %747 = vmatpush1.bf16.msra.mxu0 0
        %748 = vmatprep.subr.bf16.mxu0 0
        %749 = vmatpush1.bf16.msra.mxu0 0
        %750 = vmatprep.subr.bf16.mxu0 0
        %751 = vmatpush1.bf16.msra.mxu0 0
        %752 = vmatprep.subr.bf16.mxu0 0
        %753 = vmatpush1.bf16.msra.mxu0 0
        %754 = vmatprep.subr.bf16.mxu0 0
        %755 = vmatpush1.bf16.msra.mxu0 0
        %756 = vmatprep.subr.bf16.mxu0 0
        %757 = vmatpush1.bf16.msra.mxu0 0
        %758 = vmatprep.subr.bf16.mxu0 0
        %759 = vmatpush1.bf16.msra.mxu0 0
        %760 = vmatprep.subr.bf16.mxu0 0
        %761 = vmatpush1.bf16.msra.mxu0 0
        %762 = vmatprep.mubr.bf16.mxu0 0
        %763 = vmatmul.mubr.bf16.gmra.mrb[0].mxu0 %v729
        %v764 = vpop.f32.mrb[0].mxu0
        %v765 = vadd.f32 0.0, %v764
        %v766 = vpop.f32.mrb[0].mxu0
        %v767 = vpop.f32.mrb[0].mxu0
        %v768 = vadd.f32 0.0, %v767
        %v769 = vpop.f32.mrb[0].mxu0
        %770 = vdwg.mxu0
        %v771 = vadd.f32 %v727, %v765
        %v772 = vadd.f32 %v728, %v768
        %v773 = vtanh.pop %v771
        %v774 = vtanh.pop %v772
        %s775 = sadd.s32 %s600, 1
        %v776 = vstv %s775
        %vm777 = vcmp.gt.s32.totalorder %v598, %v776
        %vm778 = vcmp.gt.s32.totalorder %v599, %v776
        %v779 = vsel %vm777, 1, 0
        %v780 = vsel %vm778, 1, 0
        %781 = vset.pattern.permute.xlu0 0
        %782 = vperm.xlu0 %781, %v779
        %v783 = vpop.permute.xlu0 %782
        %784 = vset.pattern.permute.xlu0 0
        %785 = vperm.xlu0 %784, %v780
        %v786 = vpop.permute.xlu0 %785
        %vm787 = vcmp.eq.s32.totalorder %v783, 1
        %vm788 = vcmp.eq.s32.totalorder %v786, 1
        %v789 = vsel %vm787, %v773, 0.0
        %v790 = vsel %vm788, %v774, 0.0
        %v791 = vpack.c.bf16 %v790, %v789
        %v793 = vunpack.c.l.b16 %v791
        %v794 = vunpack.c.h.b16 %v791
        %v795 = vpack.c.b16 %v793, %v793
        %v796 = vpack.c.b16 %v794, %v794
        %s799 = scalar_lea.vmem %s355, 8 [#allocation5]
        %800 = vst [vmem:[%s799] sm:$0xf] %v795
        %801 = vst [vmem:[%s799 + $0x4] sm:$0xf] %v796
        %v802 = vsel %vm787, %v773, %v724
        %v803 = vsel %vm788, %v774, %v725
        %s804 = scalar_lea.vmem [#allocation3], 32
        %v805 = vld [vmem:[%s804] sm:$0xff]
        %v806 = vld [vmem:[%s804 + $0x8] sm:$0xff]
        %v807 = vpack.c.bf16 %v803, %v802
        %808 = vmatprep.subr.bf16.mxu0 0
        %809 = vmatpush1.bf16.msra.mxu0 %v638
        %810 = vmatprep.subr.bf16.mxu0 0
        %811 = vmatpush1.bf16.msra.mxu0 %v639
        %812 = vmatprep.subr.bf16.mxu0 0
        %813 = vmatpush1.bf16.msra.mxu0 %v640
        %814 = vmatprep.subr.bf16.mxu0 0
        %815 = vmatpush1.bf16.msra.mxu0 %v641
        %816 = vmatprep.subr.bf16.mxu0 0
        %817 = vmatpush1.bf16.msra.mxu0 %v642
        %818 = vmatprep.subr.bf16.mxu0 0
        %819 = vmatpush1.bf16.msra.mxu0 %v643
        %820 = vmatprep.subr.bf16.mxu0 0
        %821 = vmatpush1.bf16.msra.mxu0 %v644
        %822 = vmatprep.subr.bf16.mxu0 0
        %823 = vmatpush1.bf16.msra.mxu0 %v645
        %824 = vmatprep.subr.bf16.mxu0 0
        %825 = vmatpush1.bf16.msra.mxu0 0
        %826 = vmatprep.subr.bf16.mxu0 0
        %827 = vmatpush1.bf16.msra.mxu0 0
        %828 = vmatprep.subr.bf16.mxu0 0
        %829 = vmatpush1.bf16.msra.mxu0 0
        %830 = vmatprep.subr.bf16.mxu0 0
        %831 = vmatpush1.bf16.msra.mxu0 0
        %832 = vmatprep.subr.bf16.mxu0 0
        %833 = vmatpush1.bf16.msra.mxu0 0
        %834 = vmatprep.subr.bf16.mxu0 0
        %835 = vmatpush1.bf16.msra.mxu0 0
        %836 = vmatprep.subr.bf16.mxu0 0
        %837 = vmatpush1.bf16.msra.mxu0 0
        %838 = vmatprep.subr.bf16.mxu0 0
        %839 = vmatpush1.bf16.msra.mxu0 0
        %840 = vmatprep.mubr.bf16.mxu0 0
        %841 = vmatmul.mubr.bf16.gmra.mrb[0].mxu0 %v807
        %v842 = vpop.f32.mrb[0].mxu0
        %v843 = vadd.f32 0.0, %v842
        %v844 = vpop.f32.mrb[0].mxu0
        %v845 = vpop.f32.mrb[0].mxu0
        %v846 = vadd.f32 0.0, %v845
        %v847 = vpop.f32.mrb[0].mxu0
        %848 = vdwg.mxu0
        %v849 = vadd.f32 %v805, %v843
        %v850 = vadd.f32 %v806, %v846
        %v851 = vtanh.pop %v849
        %v852 = vtanh.pop %v850
        %s853 = sadd.s32 %s600, 2
        %v854 = vstv %s853
        %vm855 = vcmp.gt.s32.totalorder %v598, %v854
        %vm856 = vcmp.gt.s32.totalorder %v599, %v854
        %v857 = vsel %vm855, 1, 0
        %v858 = vsel %vm856, 1, 0
        %859 = vset.pattern.permute.xlu0 0
        %860 = vperm.xlu0 %859, %v857
        %v861 = vpop.permute.xlu0 %860
        %862 = vset.pattern.permute.xlu0 0
        %863 = vperm.xlu0 %862, %v858
        %v864 = vpop.permute.xlu0 %863
        %vm865 = vcmp.eq.s32.totalorder %v861, 1
        %vm866 = vcmp.eq.s32.totalorder %v864, 1
        %v867 = vsel %vm865, %v851, 0.0
        %v868 = vsel %vm866, %v852, 0.0
        %v869 = vpack.c.bf16 %v868, %v867
        %v871 = vunpack.c.l.b16 %v869
        %v872 = vunpack.c.h.b16 %v869
        %v873 = vpack.c.b16 %v871, %v871
        %v874 = vpack.c.b16 %v872, %v872
        %s877 = scalar_lea.vmem %s355, 16 [#allocation5]
        %878 = vst [vmem:[%s877] sm:$0xf] %v873
        %879 = vst [vmem:[%s877 + $0x4] sm:$0xf] %v874
        %v880 = vsel %vm865, %v851, %v802
        %v881 = vsel %vm866, %v852, %v803
        %s882 = scalar_lea.vmem [#allocation3], 48
        %v883 = vld [vmem:[%s882] sm:$0xff]
        %v884 = vld [vmem:[%s882 + $0x8] sm:$0xff]
        %v885 = vpack.c.bf16 %v881, %v880
        %886 = vmatprep.subr.bf16.mxu0 0
        %887 = vmatpush1.bf16.msra.mxu0 %v638
        %888 = vmatprep.subr.bf16.mxu0 0
        %889 = vmatpush1.bf16.msra.mxu0 %v639
        %890 = vmatprep.subr.bf16.mxu0 0
        %891 = vmatpush1.bf16.msra.mxu0 %v640
        %892 = vmatprep.subr.bf16.mxu0 0
        %893 = vmatpush1.bf16.msra.mxu0 %v641
        %894 = vmatprep.subr.bf16.mxu0 0
        %895 = vmatpush1.bf16.msra.mxu0 %v642
        %896 = vmatprep.subr.bf16.mxu0 0
        %897 = vmatpush1.bf16.msra.mxu0 %v643
        %898 = vmatprep.subr.bf16.mxu0 0
        %899 = vmatpush1.bf16.msra.mxu0 %v644
        %900 = vmatprep.subr.bf16.mxu0 0
        %901 = vmatpush1.bf16.msra.mxu0 %v645
        %902 = vmatprep.subr.bf16.mxu0 0
        %903 = vmatpush1.bf16.msra.mxu0 0
        %904 = vmatprep.subr.bf16.mxu0 0
        %905 = vmatpush1.bf16.msra.mxu0 0
        %906 = vmatprep.subr.bf16.mxu0 0
        %907 = vmatpush1.bf16.msra.mxu0 0
        %908 = vmatprep.subr.bf16.mxu0 0
        %909 = vmatpush1.bf16.msra.mxu0 0
        %910 = vmatprep.subr.bf16.mxu0 0
        %911 = vmatpush1.bf16.msra.mxu0 0
        %912 = vmatprep.subr.bf16.mxu0 0
        %913 = vmatpush1.bf16.msra.mxu0 0
        %914 = vmatprep.subr.bf16.mxu0 0
        %915 = vmatpush1.bf16.msra.mxu0 0
        %916 = vmatprep.subr.bf16.mxu0 0
        %917 = vmatpush1.bf16.msra.mxu0 0
        %918 = vmatprep.mubr.bf16.mxu0 0
        %919 = vmatmul.mubr.bf16.gmra.mrb[0].mxu0 %v885
        %v920 = vpop.f32.mrb[0].mxu0
        %v921 = vadd.f32 0.0, %v920
        %v922 = vpop.f32.mrb[0].mxu0
        %v923 = vpop.f32.mrb[0].mxu0
        %v924 = vadd.f32 0.0, %v923
        %v925 = vpop.f32.mrb[0].mxu0
        %926 = vdwg.mxu0
        %v927 = vadd.f32 %v883, %v921
        %v928 = vadd.f32 %v884, %v924
        %v929 = vtanh.pop %v927
        %v930 = vtanh.pop %v928
        %s931 = sadd.s32 %s600, 3
        %v932 = vstv %s931
        %vm933 = vcmp.gt.s32.totalorder %v598, %v932
        %vm934 = vcmp.gt.s32.totalorder %v599, %v932
        %v935 = vsel %vm933, 1, 0
        %v936 = vsel %vm934, 1, 0
        %937 = vset.pattern.permute.xlu0 0
        %938 = vperm.xlu0 %937, %v935
        %v939 = vpop.permute.xlu0 %938
        %940 = vset.pattern.permute.xlu0 0
        %941 = vperm.xlu0 %940, %v936
        %v942 = vpop.permute.xlu0 %941
        %vm943 = vcmp.eq.s32.totalorder %v939, 1
        %vm944 = vcmp.eq.s32.totalorder %v942, 1
        %v945 = vsel %vm943, %v929, 0.0
        %v946 = vsel %vm944, %v930, 0.0
        %v947 = vpack.c.bf16 %v946, %v945
        %v949 = vunpack.c.l.b16 %v947
        %v950 = vunpack.c.h.b16 %v947
        %v951 = vpack.c.b16 %v949, %v949
        %v952 = vpack.c.b16 %v950, %v950
        %s955 = scalar_lea.vmem %s355, 24 [#allocation5]
        %956 = vst [vmem:[%s955] sm:$0xf] %v951
        %957 = vst [vmem:[%s955 + $0x4] sm:$0xf] %v952
        %v958 = vsel %vm943, %v929, %v880
        %v959 = vsel %vm944, %v930, %v881
        %s960 = scalar_lea.vmem [#allocation3], 64
        %v961 = vld [vmem:[%s960] sm:$0xff]
        %v962 = vld [vmem:[%s960 + $0x8] sm:$0xff]
        %v963 = vpack.c.bf16 %v959, %v958
        %964 = vmatprep.subr.bf16.mxu0 0
        %965 = vmatpush1.bf16.msra.mxu0 %v638
        %966 = vmatprep.subr.bf16.mxu0 0
        %967 = vmatpush1.bf16.msra.mxu0 %v639
        %968 = vmatprep.subr.bf16.mxu0 0
        %969 = vmatpush1.bf16.msra.mxu0 %v640
        %970 = vmatprep.subr.bf16.mxu0 0
        %971 = vmatpush1.bf16.msra.mxu0 %v641
        %972 = vmatprep.subr.bf16.mxu0 0
        %973 = vmatpush1.bf16.msra.mxu0 %v642
        %974 = vmatprep.subr.bf16.mxu0 0
        %975 = vmatpush1.bf16.msra.mxu0 %v643
        %976 = vmatprep.subr.bf16.mxu0 0
        %977 = vmatpush1.bf16.msra.mxu0 %v644
        %978 = vmatprep.subr.bf16.mxu0 0
        %979 = vmatpush1.bf16.msra.mxu0 %v645
        %980 = vmatprep.subr.bf16.mxu0 0
        %981 = vmatpush1.bf16.msra.mxu0 0
        %982 = vmatprep.subr.bf16.mxu0 0
        %983 = vmatpush1.bf16.msra.mxu0 0
        %984 = vmatprep.subr.bf16.mxu0 0
        %985 = vmatpush1.bf16.msra.mxu0 0
        %986 = vmatprep.subr.bf16.mxu0 0
        %987 = vmatpush1.bf16.msra.mxu0 0
        %988 = vmatprep.subr.bf16.mxu0 0
        %989 = vmatpush1.bf16.msra.mxu0 0
        %990 = vmatprep.subr.bf16.mxu0 0
        %991 = vmatpush1.bf16.msra.mxu0 0
        %992 = vmatprep.subr.bf16.mxu0 0
        %993 = vmatpush1.bf16.msra.mxu0 0
        %994 = vmatprep.subr.bf16.mxu0 0
        %995 = vmatpush1.bf16.msra.mxu0 0
        %996 = vmatprep.mubr.bf16.mxu0 0
        %997 = vmatmul.mubr.bf16.gmra.mrb[0].mxu0 %v963
        %v998 = vpop.f32.mrb[0].mxu0
        %v999 = vadd.f32 0.0, %v998
        %v1000 = vpop.f32.mrb[0].mxu0
        %v1001 = vpop.f32.mrb[0].mxu0
        %v1002 = vadd.f32 0.0, %v1001
        %v1003 = vpop.f32.mrb[0].mxu0
        %1004 = vdwg.mxu0
        %v1005 = vadd.f32 %v961, %v999
        %v1006 = vadd.f32 %v962, %v1002
        %v1007 = vtanh.pop %v1005
        %v1008 = vtanh.pop %v1006
        %s1009 = sadd.s32 %s600, 4
        %v1010 = vstv %s1009
        %vm1011 = vcmp.gt.s32.totalorder %v598, %v1010
        %vm1012 = vcmp.gt.s32.totalorder %v599, %v1010
        %v1013 = vsel %vm1011, 1, 0
        %v1014 = vsel %vm1012, 1, 0
        %1015 = vset.pattern.permute.xlu0 0
        %1016 = vperm.xlu0 %1015, %v1013
        %v1017 = vpop.permute.xlu0 %1016
        %1018 = vset.pattern.permute.xlu0 0
        %1019 = vperm.xlu0 %1018, %v1014
        %v1020 = vpop.permute.xlu0 %1019
        %vm1021 = vcmp.eq.s32.totalorder %v1017, 1
        %vm1022 = vcmp.eq.s32.totalorder %v1020, 1
        %v1023 = vsel %vm1021, %v1007, 0.0
        %v1024 = vsel %vm1022, %v1008, 0.0
        %v1025 = vpack.c.bf16 %v1024, %v1023
        %v1027 = vunpack.c.l.b16 %v1025
        %v1028 = vunpack.c.h.b16 %v1025
        %v1029 = vpack.c.b16 %v1027, %v1027
        %v1030 = vpack.c.b16 %v1028, %v1028
        %s1033 = scalar_lea.vmem %s355, 32 [#allocation5]
        %1034 = vst [vmem:[%s1033] sm:$0xf] %v1029
        %1035 = vst [vmem:[%s1033 + $0x4] sm:$0xf] %v1030
        %v1036 = vsel %vm1021, %v1007, %v958
        %v1037 = vsel %vm1022, %v1008, %v959
        %s1038 = scalar_lea.vmem [#allocation3], 80
        %v1039 = vld [vmem:[%s1038] sm:$0xff]
        %v1040 = vld [vmem:[%s1038 + $0x8] sm:$0xff]
        %v1041 = vpack.c.bf16 %v1037, %v1036
        %1042 = vmatprep.subr.bf16.mxu0 0
        %1043 = vmatpush1.bf16.msra.mxu0 %v638
        %1044 = vmatprep.subr.bf16.mxu0 0
        %1045 = vmatpush1.bf16.msra.mxu0 %v639
        %1046 = vmatprep.subr.bf16.mxu0 0
        %1047 = vmatpush1.bf16.msra.mxu0 %v640
        %1048 = vmatprep.subr.bf16.mxu0 0
        %1049 = vmatpush1.bf16.msra.mxu0 %v641
        %1050 = vmatprep.subr.bf16.mxu0 0
        %1051 = vmatpush1.bf16.msra.mxu0 %v642
        %1052 = vmatprep.subr.bf16.mxu0 0
        %1053 = vmatpush1.bf16.msra.mxu0 %v643
        %1054 = vmatprep.subr.bf16.mxu0 0
        %1055 = vmatpush1.bf16.msra.mxu0 %v644
        %1056 = vmatprep.subr.bf16.mxu0 0
        %1057 = vmatpush1.bf16.msra.mxu0 %v645
        %1058 = vmatprep.subr.bf16.mxu0 0
        %1059 = vmatpush1.bf16.msra.mxu0 0
        %1060 = vmatprep.subr.bf16.mxu0 0
        %1061 = vmatpush1.bf16.msra.mxu0 0
        %1062 = vmatprep.subr.bf16.mxu0 0
        %1063 = vmatpush1.bf16.msra.mxu0 0
        %1064 = vmatprep.subr.bf16.mxu0 0
        %1065 = vmatpush1.bf16.msra.mxu0 0
        %1066 = vmatprep.subr.bf16.mxu0 0
        %1067 = vmatpush1.bf16.msra.mxu0 0
        %1068 = vmatprep.subr.bf16.mxu0 0
        %1069 = vmatpush1.bf16.msra.mxu0 0
        %1070 = vmatprep.subr.bf16.mxu0 0
        %1071 = vmatpush1.bf16.msra.mxu0 0
        %1072 = vmatprep.subr.bf16.mxu0 0
        %1073 = vmatpush1.bf16.msra.mxu0 0
        %1074 = vmatprep.mubr.bf16.mxu0 0
        %1075 = vmatmul.mubr.bf16.gmra.mrb[0].mxu0 %v1041
        %v1076 = vpop.f32.mrb[0].mxu0
        %v1077 = vadd.f32 0.0, %v1076
        %v1078 = vpop.f32.mrb[0].mxu0
        %v1079 = vpop.f32.mrb[0].mxu0
        %v1080 = vadd.f32 0.0, %v1079
        %v1081 = vpop.f32.mrb[0].mxu0
        %1082 = vdwg.mxu0
        %v1083 = vadd.f32 %v1039, %v1077
        %v1084 = vadd.f32 %v1040, %v1080
        %v1085 = vtanh.pop %v1083
        %v1086 = vtanh.pop %v1084
        %s1087 = sadd.s32 %s600, 5
        %v1088 = vstv %s1087
        %vm1089 = vcmp.gt.s32.totalorder %v598, %v1088
        %vm1090 = vcmp.gt.s32.totalorder %v599, %v1088
        %v1091 = vsel %vm1089, 1, 0
        %v1092 = vsel %vm1090, 1, 0
        %1093 = vset.pattern.permute.xlu0 0
        %1094 = vperm.xlu0 %1093, %v1091
        %v1095 = vpop.permute.xlu0 %1094
        %1096 = vset.pattern.permute.xlu0 0
        %1097 = vperm.xlu0 %1096, %v1092
        %v1098 = vpop.permute.xlu0 %1097
        %vm1099 = vcmp.eq.s32.totalorder %v1095, 1
        %vm1100 = vcmp.eq.s32.totalorder %v1098, 1
        %v1101 = vsel %vm1099, %v1085, 0.0
        %v1102 = vsel %vm1100, %v1086, 0.0
        %v1103 = vpack.c.bf16 %v1102, %v1101
        %v1105 = vunpack.c.l.b16 %v1103
        %v1106 = vunpack.c.h.b16 %v1103
        %v1107 = vpack.c.b16 %v1105, %v1105
        %v1108 = vpack.c.b16 %v1106, %v1106
        %s1111 = scalar_lea.vmem %s355, 40 [#allocation5]
        %1112 = vst [vmem:[%s1111] sm:$0xf] %v1107
        %1113 = vst [vmem:[%s1111 + $0x4] sm:$0xf] %v1108
        %v1114 = vsel %vm1099, %v1085, %v1036
        %v1115 = vsel %vm1100, %v1086, %v1037
        %s1116 = scalar_lea.vmem [#allocation3], 96
        %v1117 = vld [vmem:[%s1116] sm:$0xff]
        %v1118 = vld [vmem:[%s1116 + $0x8] sm:$0xff]
        %v1119 = vpack.c.bf16 %v1115, %v1114
        %1120 = vmatprep.subr.bf16.mxu0 0
        %1121 = vmatpush1.bf16.msra.mxu0 %v638
        %1122 = vmatprep.subr.bf16.mxu0 0
        %1123 = vmatpush1.bf16.msra.mxu0 %v639
        %1124 = vmatprep.subr.bf16.mxu0 0
        %1125 = vmatpush1.bf16.msra.mxu0 %v640
        %1126 = vmatprep.subr.bf16.mxu0 0
        %1127 = vmatpush1.bf16.msra.mxu0 %v641
        %1128 = vmatprep.subr.bf16.mxu0 0
        %1129 = vmatpush1.bf16.msra.mxu0 %v642
        %1130 = vmatprep.subr.bf16.mxu0 0
        %1131 = vmatpush1.bf16.msra.mxu0 %v643
        %1132 = vmatprep.subr.bf16.mxu0 0
        %1133 = vmatpush1.bf16.msra.mxu0 %v644
        %1134 = vmatprep.subr.bf16.mxu0 0
        %1135 = vmatpush1.bf16.msra.mxu0 %v645
        %1136 = vmatprep.subr.bf16.mxu0 0
        %1137 = vmatpush1.bf16.msra.mxu0 0
        %1138 = vmatprep.subr.bf16.mxu0 0
        %1139 = vmatpush1.bf16.msra.mxu0 0
        %1140 = vmatprep.subr.bf16.mxu0 0
        %1141 = vmatpush1.bf16.msra.mxu0 0
        %1142 = vmatprep.subr.bf16.mxu0 0
        %1143 = vmatpush1.bf16.msra.mxu0 0
        %1144 = vmatprep.subr.bf16.mxu0 0
        %1145 = vmatpush1.bf16.msra.mxu0 0
        %1146 = vmatprep.subr.bf16.mxu0 0
        %1147 = vmatpush1.bf16.msra.mxu0 0
        %1148 = vmatprep.subr.bf16.mxu0 0
        %1149 = vmatpush1.bf16.msra.mxu0 0
        %1150 = vmatprep.subr.bf16.mxu0 0
        %1151 = vmatpush1.bf16.msra.mxu0 0
        %1152 = vmatprep.mubr.bf16.mxu0 0
        %1153 = vmatmul.mubr.bf16.gmra.mrb[0].mxu0 %v1119
        %v1154 = vpop.f32.mrb[0].mxu0
        %v1155 = vadd.f32 0.0, %v1154
        %v1156 = vpop.f32.mrb[0].mxu0
        %v1157 = vpop.f32.mrb[0].mxu0
        %v1158 = vadd.f32 0.0, %v1157
        %v1159 = vpop.f32.mrb[0].mxu0
        %1160 = vdwg.mxu0
        %v1161 = vadd.f32 %v1117, %v1155
        %v1162 = vadd.f32 %v1118, %v1158
        %v1163 = vtanh.pop %v1161
        %v1164 = vtanh.pop %v1162
        %s1165 = sadd.s32 %s600, 6
        %v1166 = vstv %s1165
        %vm1167 = vcmp.gt.s32.totalorder %v598, %v1166
        %vm1168 = vcmp.gt.s32.totalorder %v599, %v1166
        %v1169 = vsel %vm1167, 1, 0
        %v1170 = vsel %vm1168, 1, 0
        %1171 = vset.pattern.permute.xlu0 0
        %1172 = vperm.xlu0 %1171, %v1169
        %v1173 = vpop.permute.xlu0 %1172
        %1174 = vset.pattern.permute.xlu0 0
        %1175 = vperm.xlu0 %1174, %v1170
        %v1176 = vpop.permute.xlu0 %1175
        %vm1177 = vcmp.eq.s32.totalorder %v1173, 1
        %vm1178 = vcmp.eq.s32.totalorder %v1176, 1
        %v1179 = vsel %vm1177, %v1163, 0.0
        %v1180 = vsel %vm1178, %v1164, 0.0
        %v1181 = vpack.c.bf16 %v1180, %v1179
        %v1183 = vunpack.c.l.b16 %v1181
        %v1184 = vunpack.c.h.b16 %v1181
        %v1185 = vpack.c.b16 %v1183, %v1183
        %v1186 = vpack.c.b16 %v1184, %v1184
        %s1189 = scalar_lea.vmem %s355, 48 [#allocation5]
        %1190 = vst [vmem:[%s1189] sm:$0xf] %v1185
        %1191 = vst [vmem:[%s1189 + $0x4] sm:$0xf] %v1186
        %v1192 = vsel %vm1177, %v1163, %v1114
        %v1193 = vsel %vm1178, %v1164, %v1115
        %s1194 = scalar_lea.vmem [#allocation3], 112
        %v1195 = vld [vmem:[%s1194] sm:$0xff]
        %v1196 = vld [vmem:[%s1194 + $0x8] sm:$0xff]
        %v1197 = vpack.c.bf16 %v1193, %v1192
        %1198 = vmatprep.subr.bf16.mxu0 0
        %1199 = vmatpush1.bf16.msra.mxu0 %v638
        %1200 = vmatprep.subr.bf16.mxu0 0
        %1201 = vmatpush1.bf16.msra.mxu0 %v639
        %1202 = vmatprep.subr.bf16.mxu0 0
        %1203 = vmatpush1.bf16.msra.mxu0 %v640
        %1204 = vmatprep.subr.bf16.mxu0 0
        %1205 = vmatpush1.bf16.msra.mxu0 %v641
        %1206 = vmatprep.subr.bf16.mxu0 0
        %1207 = vmatpush1.bf16.msra.mxu0 %v642
        %1208 = vmatprep.subr.bf16.mxu0 0
        %1209 = vmatpush1.bf16.msra.mxu0 %v643
        %1210 = vmatprep.subr.bf16.mxu0 0
        %1211 = vmatpush1.bf16.msra.mxu0 %v644
        %1212 = vmatprep.subr.bf16.mxu0 0
        %1213 = vmatpush1.bf16.msra.mxu0 %v645
        %1214 = vmatprep.subr.bf16.mxu0 0
        %1215 = vmatpush1.bf16.msra.mxu0 0
        %1216 = vmatprep.subr.bf16.mxu0 0
        %1217 = vmatpush1.bf16.msra.mxu0 0
        %1218 = vmatprep.subr.bf16.mxu0 0
        %1219 = vmatpush1.bf16.msra.mxu0 0
        %1220 = vmatprep.subr.bf16.mxu0 0
        %1221 = vmatpush1.bf16.msra.mxu0 0
        %1222 = vmatprep.subr.bf16.mxu0 0
        %1223 = vmatpush1.bf16.msra.mxu0 0
        %1224 = vmatprep.subr.bf16.mxu0 0
        %1225 = vmatpush1.bf16.msra.mxu0 0
        %1226 = vmatprep.subr.bf16.mxu0 0
        %1227 = vmatpush1.bf16.msra.mxu0 0
        %1228 = vmatprep.subr.bf16.mxu0 0
        %1229 = vmatpush1.bf16.msra.mxu0 0
        %1230 = vmatprep.mubr.bf16.mxu0 0
        %1231 = vmatmul.mubr.bf16.gmra.mrb[0].mxu0 %v1197
        %v1232 = vpop.f32.mrb[0].mxu0
        %v1233 = vadd.f32 0.0, %v1232
        %v1234 = vpop.f32.mrb[0].mxu0
        %v1235 = vpop.f32.mrb[0].mxu0
        %v1236 = vadd.f32 0.0, %v1235
        %v1237 = vpop.f32.mrb[0].mxu0
        %1238 = vdwg.mxu0
        %v1239 = vadd.f32 %v1195, %v1233
        %v1240 = vadd.f32 %v1196, %v1236
        %v1241 = vtanh.pop %v1239
        %v1242 = vtanh.pop %v1240
        %s1243 = sadd.s32 %s600, 7
        %v1244 = vstv %s1243
        %vm1245 = vcmp.gt.s32.totalorder %v598, %v1244
        %vm1246 = vcmp.gt.s32.totalorder %v599, %v1244
        %v1247 = vsel %vm1245, 1, 0
        %v1248 = vsel %vm1246, 1, 0
        %1249 = vset.pattern.permute.xlu0 0
        %1250 = vperm.xlu0 %1249, %v1247
        %v1251 = vpop.permute.xlu0 %1250
        %1252 = vset.pattern.permute.xlu0 0
        %1253 = vperm.xlu0 %1252, %v1248
        %v1254 = vpop.permute.xlu0 %1253
        %vm1255 = vcmp.eq.s32.totalorder %v1251, 1
        %vm1256 = vcmp.eq.s32.totalorder %v1254, 1
        %v1257 = vsel %vm1255, %v1241, 0.0
        %v1258 = vsel %vm1256, %v1242, 0.0
        %v1259 = vpack.c.bf16 %v1258, %v1257
        %v1261 = vunpack.c.l.b16 %v1259
        %v1262 = vunpack.c.h.b16 %v1259
        %v1263 = vpack.c.b16 %v1261, %v1261
        %v1264 = vpack.c.b16 %v1262, %v1262
        %s1267 = scalar_lea.vmem %s355, 56 [#allocation5]
        %1268 = vst [vmem:[%s1267] sm:$0xf] %v1263
        %1269 = vst [vmem:[%s1267 + $0x4] sm:$0xf] %v1264
        %v1270 = vsel %vm1255, %v1241, %v1192
        %v1271 = vsel %vm1256, %v1242, %v1193
        %1272 = vst [vmem:[#allocation2] sm:$0xff] %v1270
        %1273 = vst [vmem:[#allocation2 + $0x8] sm:$0xff] %v1271
        %s1274 = sand.u32 %s155, 1
        %s1275 = sand.u32 %s155, 1
        %s1276 = smul.addr %s1275, 64
        %s1277 = scalar_lea.vmem [#allocation5], %s1276
        // Predicated region
        $region86: #{my_rnn_forward.2} parent=76 // pred_check
          %p1278 = pneg %p165
        $region87: #{my_rnn_forward.2} parent=76 // pred_check_branch
          %1280 = sbr.rel (%p1278) target = $region89
        $region88: #{my_rnn_forward.2} parent=76 // pred_region
          %s1281 = smul.u32 8, %s21
          %s1282 = smul.u32 2, %s20
          %s1283 = smul.addr %s1281, 4
          %s1284 = sadd.s32 %s1282, %s1283
          %s1285 = smul.addr %s1284, 4
          %s1286 = scalar_lea.vmem %s5, %s1285
          // Predicated region
          $region90: #{my_rnn_forward.2} parent=88 // pred_check
            _
          $region91: #{my_rnn_forward.2} parent=88 // pred_check_branch
            %1288 = sbr.rel (0) target = $region93
          $region92: #{my_rnn_forward.2} parent=88 // pred_region
            // Predicated region
            $region94: #{my_rnn_forward.2} parent=92 // pred_check
              _
            $region95: #{my_rnn_forward.2} parent=92 // pred_check_branch
              %1290 = sbr.rel target = $region97
            $region96: #{my_rnn_forward.2} parent=92 // pred_region
              // Predicated region
              $region109: #{my_rnn_forward.2} parent=96 // pred_check
                _
              $region110: #{my_rnn_forward.2} parent=96 // pred_check_branch
                %1335 = sbr.rel (0) target = $region112
              $region111: #{my_rnn_forward.2} parent=96 // pred_region
                loop: start=0, step=1, limit=1
                $region113: #{my_rnn_forward.2} parent=111 // loop_pre_header
                  _
                $region114: #{my_rnn_forward.2} parent=111 // loop_header
                  %s1337 = sphi 0, %s1341
                  %p1338 = scmp.ge.s32.totalorder %s1337, 1
                  %s1342 = sphi %s1277, %s1277
                  %s1343 = sphi %s1286, %s1286
                $region115: #{my_rnn_forward.2} parent=111 // loop_header_branch
                  %1340 = sbr.rel (%p1338) target = $region119
                $region116: #{my_rnn_forward.2} parent=111 // loop_body
                  _
                $region117: #{my_rnn_forward.2} parent=111 // loop_footer
                  %s1341 = sadd.s32 1, %s1337
                $region118: #{my_rnn_forward.2} parent=111 // loop_footer_branch
                  %1336 = sbr.rel target = $region114
                $region119: #{my_rnn_forward.2} parent=111 // loop_exit
                  _
                loop: start=0, step=1, limit=1
                $region120: #{my_rnn_forward.2} parent=111 // loop_pre_header
                  _
                $region121: #{my_rnn_forward.2} parent=111 // loop_header
                  %s1346 = sphi 0, %s1350
                  %p1347 = scmp.ge.s32.totalorder %s1346, 1
                  %s1351 = sphi %s1277, %s1277
                  %s1352 = sphi %s1286, %s1286
                $region122: #{my_rnn_forward.2} parent=111 // loop_header_branch
                  %1349 = sbr.rel (%p1347) target = $region126
                $region123: #{my_rnn_forward.2} parent=111 // loop_body
                  %v1353 = vld [vmem:[%s1351] sm:$0xf]
                  %1354 = vst [vmem:[%s1352] sm:$0xf] %v1353
                  %v1355 = vld [vmem:[%s1351 + $0x4] sm:$0xf]
                  %1356 = vst [vmem:[%s1352 + $0x4] sm:$0xf] %v1355
                  %v1357 = vld [vmem:[%s1351 + $0x8] sm:$0xf]
                  %1358 = vst [vmem:[%s1352 + $0x10] sm:$0xf] %v1357
                  %v1359 = vld [vmem:[%s1351 + $0xc] sm:$0xf]
                  %1360 = vst [vmem:[%s1352 + $0x14] sm:$0xf] %v1359
                  %v1361 = vld [vmem:[%s1351 + $0x10] sm:$0xf]
                  %1362 = vst [vmem:[%s1352 + $0x20] sm:$0xf] %v1361
                  %v1363 = vld [vmem:[%s1351 + $0x14] sm:$0xf]
                  %1364 = vst [vmem:[%s1352 + $0x24] sm:$0xf] %v1363
                  %v1365 = vld [vmem:[%s1351 + $0x18] sm:$0xf]
                  %1366 = vst [vmem:[%s1352 + $0x30] sm:$0xf] %v1365
                  %v1367 = vld [vmem:[%s1351 + $0x1c] sm:$0xf]
                  %1368 = vst [vmem:[%s1352 + $0x34] sm:$0xf] %v1367
                  %v1369 = vld [vmem:[%s1351 + $0x20] sm:$0xf]
                  %1370 = vst [vmem:[%s1352 + $0x40] sm:$0xf] %v1369
                  %v1371 = vld [vmem:[%s1351 + $0x24] sm:$0xf]
                  %1372 = vst [vmem:[%s1352 + $0x44] sm:$0xf] %v1371
                  %v1373 = vld [vmem:[%s1351 + $0x28] sm:$0xf]
                  %1374 = vst [vmem:[%s1352 + $0x50] sm:$0xf] %v1373
                  %v1375 = vld [vmem:[%s1351 + $0x2c] sm:$0xf]
                  %1376 = vst [vmem:[%s1352 + $0x54] sm:$0xf] %v1375
                  %v1377 = vld [vmem:[%s1351 + $0x30] sm:$0xf]
                  %1378 = vst [vmem:[%s1352 + $0x60] sm:$0xf] %v1377
                  %v1379 = vld [vmem:[%s1351 + $0x34] sm:$0xf]
                  %1380 = vst [vmem:[%s1352 + $0x64] sm:$0xf] %v1379
                  %v1381 = vld [vmem:[%s1351 + $0x38] sm:$0xf]
                  %1382 = vst [vmem:[%s1352 + $0x70] sm:$0xf] %v1381
                  %v1383 = vld [vmem:[%s1351 + $0x3c] sm:$0xf]
                  %1384 = vst [vmem:[%s1352 + $0x74] sm:$0xf] %v1383
                $region124: #{my_rnn_forward.2} parent=111 // loop_footer
                  %s1350 = sadd.s32 1, %s1346
                $region125: #{my_rnn_forward.2} parent=111 // loop_footer_branch
                  %1345 = sbr.rel target = $region121
                $region126: #{my_rnn_forward.2} parent=111 // loop_exit
                  _
              $region112: #{my_rnn_forward.2} parent=96 // pred_fallthru
                _
            $region97: #{my_rnn_forward.2} parent=92 // pred_fallthru
              _
            // Predicated region
            $region98: #{my_rnn_forward.2} parent=92 // pred_check
              _
            $region99: #{my_rnn_forward.2} parent=92 // pred_check_branch
              %1292 = sbr.rel (0) target = $region101
            $region100: #{my_rnn_forward.2} parent=92 // pred_region
              loop: start=0, step=1, limit=1
              $region102: #{my_rnn_forward.2} parent=100 // loop_pre_header
                _
              $region103: #{my_rnn_forward.2} parent=100 // loop_header
                %s1295 = sphi 0, %s1299
                %p1296 = scmp.ge.s32.totalorder %s1295, 1
                %s1300 = sphi %s1277, %s1277
                %s1301 = sphi %s1286, %s1286
              $region104: #{my_rnn_forward.2} parent=100 // loop_header_branch
                %1298 = sbr.rel (%p1296) target = $region108
              $region105: #{my_rnn_forward.2} parent=100 // loop_body
                %v1302 = vld [vmem:[%s1300] sm:$0xf]
                %1303 = vst [vmem:[%s1301] sm:$0xf] %v1302
                %v1304 = vld [vmem:[%s1300 + $0x4] sm:$0xf]
                %1305 = vst [vmem:[%s1301 + $0x4] sm:$0xf] %v1304
                %v1306 = vld [vmem:[%s1300 + $0x8] sm:$0xf]
                %1307 = vst [vmem:[%s1301 + $0x10] sm:$0xf] %v1306
                %v1308 = vld [vmem:[%s1300 + $0xc] sm:$0xf]
                %1309 = vst [vmem:[%s1301 + $0x14] sm:$0xf] %v1308
                %v1310 = vld [vmem:[%s1300 + $0x10] sm:$0xf]
                %1311 = vst [vmem:[%s1301 + $0x20] sm:$0xf] %v1310
                %v1312 = vld [vmem:[%s1300 + $0x14] sm:$0xf]
                %1313 = vst [vmem:[%s1301 + $0x24] sm:$0xf] %v1312
                %v1314 = vld [vmem:[%s1300 + $0x18] sm:$0xf]
                %1315 = vst [vmem:[%s1301 + $0x30] sm:$0xf] %v1314
                %v1316 = vld [vmem:[%s1300 + $0x1c] sm:$0xf]
                %1317 = vst [vmem:[%s1301 + $0x34] sm:$0xf] %v1316
                %v1318 = vld [vmem:[%s1300 + $0x20] sm:$0xf]
                %1319 = vst [vmem:[%s1301 + $0x40] sm:$0xf] %v1318
                %v1320 = vld [vmem:[%s1300 + $0x24] sm:$0xf]
                %1321 = vst [vmem:[%s1301 + $0x44] sm:$0xf] %v1320
                %v1322 = vld [vmem:[%s1300 + $0x28] sm:$0xf]
                %1323 = vst [vmem:[%s1301 + $0x50] sm:$0xf] %v1322
                %v1324 = vld [vmem:[%s1300 + $0x2c] sm:$0xf]
                %1325 = vst [vmem:[%s1301 + $0x54] sm:$0xf] %v1324
                %v1326 = vld [vmem:[%s1300 + $0x30] sm:$0xf]
                %1327 = vst [vmem:[%s1301 + $0x60] sm:$0xf] %v1326
                %v1328 = vld [vmem:[%s1300 + $0x34] sm:$0xf]
                %1329 = vst [vmem:[%s1301 + $0x64] sm:$0xf] %v1328
                %v1330 = vld [vmem:[%s1300 + $0x38] sm:$0xf]
                %1331 = vst [vmem:[%s1301 + $0x70] sm:$0xf] %v1330
                %v1332 = vld [vmem:[%s1300 + $0x3c] sm:$0xf]
                %1333 = vst [vmem:[%s1301 + $0x74] sm:$0xf] %v1332
              $region106: #{my_rnn_forward.2} parent=100 // loop_footer
                %s1299 = sadd.s32 1, %s1295
              $region107: #{my_rnn_forward.2} parent=100 // loop_footer_branch
                %1294 = sbr.rel target = $region103
              $region108: #{my_rnn_forward.2} parent=100 // loop_exit
                _
            $region101: #{my_rnn_forward.2} parent=92 // pred_fallthru
              _
          $region93: #{my_rnn_forward.2} parent=88 // pred_fallthru
            _
          %1385 = vnop
        $region89: #{my_rnn_forward.2} parent=76 // pred_fallthru
          _
      $region77: #{my_rnn_forward.2} parent=5 // pred_fallthru
        _
      %p1386 = scmp.le.s32.totalorder 2, %s11
      // Predicated region
      $region127: #{my_rnn_forward.2} parent=5 // pred_check
        %p1387 = pneg %p1386
      $region128: #{my_rnn_forward.2} parent=5 // pred_check_branch
        %1389 = sbr.rel (%p1387) target = $region130
      $region129: #{my_rnn_forward.2} parent=5 // pred_region
        %s1390 = ssub.s32 %s11, 2
        // Predicated region
        $region131: #{my_rnn_forward.2} parent=129 // pred_check
          %p1391 = pneg %p171
        $region132: #{my_rnn_forward.2} parent=129 // pred_check_branch
          %1393 = sbr.rel (%p1391) target = $region134
        $region133: #{my_rnn_forward.2} parent=129 // pred_region
          %s1394 = sand.u32 %s156, 1
          %s1395 = sand.u32 %s156, 1
          %s1396 = smul.addr %s1395, 64
          %s1397 = scalar_lea.vmem [#allocation5], %s1396
        $region134: #{my_rnn_forward.2} parent=129 // pred_fallthru
          _
      $region130: #{my_rnn_forward.2} parent=5 // pred_fallthru
        _
    $region6: #{my_rnn_forward.2} parent=1 // loop_footer
      %s15 = sadd.s32 1, %s11
    $region7: #{my_rnn_forward.2} parent=1 // loop_footer_branch
      %10 = sbr.rel target = $region3
    $region8: #{my_rnn_forward.2} parent=1 // loop_exit
      _

// kernel: my_rnn_forward.3
$region0: #{my_rnn_forward.3}
  #allocation0 [shape = 'u32[]', space=smem, size = 0x4, offset = 0x4, fixed_abs, tag = 'smem constant byte address 0x4 - core index']
  #allocation1 [shape = 'u32[144,128]{1,0:T(1,128)}', space=vmem, size = 0x12000, scoped, tag = 'internal scratch']
  %s0 = inlined_call_operand.vmem [shape: bf16[8,32,128], index: 0, kind: input, shape index: {}]
  %s1 = inlined_call_operand.vmem [shape: bf16[128,128], index: 1, kind: input, shape index: {}]
  %s2 = inlined_call_operand.vmem [shape: f32[1,128], index: 2, kind: input, shape index: {}]
  %s3 = inlined_call_operand.vmem [shape: bf16[128,128], index: 3, kind: input, shape index: {}]
  %s4 = inlined_call_operand.vmem [shape: f32[1,128], index: 4, kind: input, shape index: {}]
  %s5 = inlined_call_operand.vmem [shape: bf16[128,128], index: 5, kind: input, shape index: {}]
  %s6 = inlined_call_operand.vmem [shape: f32[1,128], index: 6, kind: input, shape index: {}]
  %s7 = inlined_call_operand.vmem [shape: f32[8,32,128], index: 7, kind: output, shape index: {}]
  %s8 = sld [smem:[#allocation0]]
  $region38: #{my_rnn_forward.3} parent=0
    _
  %s10 = ssub.s32 1, %s8
  %s11 = scalar_select 0, %s10, %s8
  // Predicated region
  $region2: #{my_rnn_forward.3} parent=0 // pred_check
    _
  $region3: #{my_rnn_forward.3} parent=0 // pred_check_branch
    %13 = sbr.rel (0) target = $region5
  $region4: #{my_rnn_forward.3} parent=0 // pred_region
    _
  $region5: #{my_rnn_forward.3} parent=0 // pred_fallthru
    _
  // Predicated region
  $region6: #{my_rnn_forward.3} parent=0 // pred_check
    _
  $region7: #{my_rnn_forward.3} parent=0 // pred_check_branch
    %15 = sbr.rel (0) target = $region9
  $region8: #{my_rnn_forward.3} parent=0 // pred_region
    _
  $region9: #{my_rnn_forward.3} parent=0 // pred_fallthru
    _
  // Predicated region
  $region10: #{my_rnn_forward.3} parent=0 // pred_check
    _
  $region11: #{my_rnn_forward.3} parent=0 // pred_check_branch
    %17 = sbr.rel (0) target = $region13
  $region12: #{my_rnn_forward.3} parent=0 // pred_region
    _
  $region13: #{my_rnn_forward.3} parent=0 // pred_fallthru
    _
  // Predicated region
  $region14: #{my_rnn_forward.3} parent=0 // pred_check
    _
  $region15: #{my_rnn_forward.3} parent=0 // pred_check_branch
    %19 = sbr.rel (0) target = $region17
  $region16: #{my_rnn_forward.3} parent=0 // pred_region
    _
  $region17: #{my_rnn_forward.3} parent=0 // pred_fallthru
    _
  // Predicated region
  $region18: #{my_rnn_forward.3} parent=0 // pred_check
    _
  $region19: #{my_rnn_forward.3} parent=0 // pred_check_branch
    %21 = sbr.rel (0) target = $region21
  $region20: #{my_rnn_forward.3} parent=0 // pred_region
    _
  $region21: #{my_rnn_forward.3} parent=0 // pred_fallthru
    _
  // Predicated region
  $region22: #{my_rnn_forward.3} parent=0 // pred_check
    _
  $region23: #{my_rnn_forward.3} parent=0 // pred_check_branch
    %23 = sbr.rel (0) target = $region25
  $region24: #{my_rnn_forward.3} parent=0 // pred_region
    _
  $region25: #{my_rnn_forward.3} parent=0 // pred_fallthru
    _
  // Predicated region
  $region26: #{my_rnn_forward.3} parent=0 // pred_check
    _
  $region27: #{my_rnn_forward.3} parent=0 // pred_check_branch
    %25 = sbr.rel (0) target = $region29
  $region28: #{my_rnn_forward.3} parent=0 // pred_region
    _
  $region29: #{my_rnn_forward.3} parent=0 // pred_fallthru
    _
  %v27 = vld [vmem:[%s0] sm:$0xf]
  %v28 = vld [vmem:[%s0 + $0x4] sm:$0xf]
  %v29 = vld [vmem:[%s0 + $0x8] sm:$0xf]
  %v30 = vld [vmem:[%s0 + $0xc] sm:$0xf]
  %v31 = vld [vmem:[%s0 + $0x10] sm:$0xf]
  %v32 = vld [vmem:[%s0 + $0x14] sm:$0xf]
  %v33 = vld [vmem:[%s0 + $0x18] sm:$0xf]
  %v34 = vld [vmem:[%s0 + $0x1c] sm:$0xf]
  %v35 = vld [vmem:[%s0 + $0x20] sm:$0xf]
  %v36 = vld [vmem:[%s0 + $0x24] sm:$0xf]
  %v37 = vld [vmem:[%s0 + $0x28] sm:$0xf]
  %v38 = vld [vmem:[%s0 + $0x2c] sm:$0xf]
  %v39 = vld [vmem:[%s0 + $0x30] sm:$0xf]
  %v40 = vld [vmem:[%s0 + $0x34] sm:$0xf]
  %v41 = vld [vmem:[%s0 + $0x38] sm:$0xf]
  %v42 = vld [vmem:[%s0 + $0x3c] sm:$0xf]
  %v43 = vld [vmem:[%s0 + $0x40] sm:$0xf]
  %v44 = vld [vmem:[%s0 + $0x44] sm:$0xf]
  %v45 = vld [vmem:[%s0 + $0x48] sm:$0xf]
  %v46 = vld [vmem:[%s0 + $0x4c] sm:$0xf]
  %v47 = vld [vmem:[%s0 + $0x50] sm:$0xf]
  %v48 = vld [vmem:[%s0 + $0x54] sm:$0xf]
  %v49 = vld [vmem:[%s0 + $0x58] sm:$0xf]
  %v50 = vld [vmem:[%s0 + $0x5c] sm:$0xf]
  %v51 = vld [vmem:[%s0 + $0x60] sm:$0xf]
  %v52 = vld [vmem:[%s0 + $0x64] sm:$0xf]
  %v53 = vld [vmem:[%s0 + $0x68] sm:$0xf]
  %v54 = vld [vmem:[%s0 + $0x6c] sm:$0xf]
  %v55 = vld [vmem:[%s0 + $0x70] sm:$0xf]
  %v56 = vld [vmem:[%s0 + $0x74] sm:$0xf]
  %v57 = vld [vmem:[%s0 + $0x78] sm:$0xf]
  %v58 = vld [vmem:[%s0 + $0x7c] sm:$0xf]
  %v59 = vmax.bf16 %v27, 0
  %v60 = vmax.bf16 %v28, 0
  %v61 = vmax.bf16 %v29, 0
  %v62 = vmax.bf16 %v30, 0
  %v63 = vmax.bf16 %v31, 0
  %v64 = vmax.bf16 %v32, 0
  %v65 = vmax.bf16 %v33, 0
  %v66 = vmax.bf16 %v34, 0
  %v67 = vmax.bf16 %v35, 0
  %v68 = vmax.bf16 %v36, 0
  %v69 = vmax.bf16 %v37, 0
  %v70 = vmax.bf16 %v38, 0
  %v71 = vmax.bf16 %v39, 0
  %v72 = vmax.bf16 %v40, 0
  %v73 = vmax.bf16 %v41, 0
  %v74 = vmax.bf16 %v42, 0
  %v75 = vmax.bf16 %v43, 0
  %v76 = vmax.bf16 %v44, 0
  %v77 = vmax.bf16 %v45, 0
  %v78 = vmax.bf16 %v46, 0
  %v79 = vmax.bf16 %v47, 0
  %v80 = vmax.bf16 %v48, 0
  %v81 = vmax.bf16 %v49, 0
  %v82 = vmax.bf16 %v50, 0
  %v83 = vmax.bf16 %v51, 0
  %v84 = vmax.bf16 %v52, 0
  %v85 = vmax.bf16 %v53, 0
  %v86 = vmax.bf16 %v54, 0
  %v87 = vmax.bf16 %v55, 0
  %v88 = vmax.bf16 %v56, 0
  %v89 = vmax.bf16 %v57, 0
  %v90 = vmax.bf16 %v58, 0
  %v91 = vld [vmem:[%s1] sm:$0xf]
  %v92 = vld [vmem:[%s1 + $0x4] sm:$0xf]
  %v93 = vld [vmem:[%s1 + $0x8] sm:$0xf]
  %v94 = vld [vmem:[%s1 + $0xc] sm:$0xf]
  %v95 = vld [vmem:[%s1 + $0x10] sm:$0xf]
  %v96 = vld [vmem:[%s1 + $0x14] sm:$0xf]
  %v97 = vld [vmem:[%s1 + $0x18] sm:$0xf]
  %v98 = vld [vmem:[%s1 + $0x1c] sm:$0xf]
  %v99 = vld [vmem:[%s1 + $0x20] sm:$0xf]
  %v100 = vld [vmem:[%s1 + $0x24] sm:$0xf]
  %v101 = vld [vmem:[%s1 + $0x28] sm:$0xf]
  %v102 = vld [vmem:[%s1 + $0x2c] sm:$0xf]
  %v103 = vld [vmem:[%s1 + $0x30] sm:$0xf]
  %v104 = vld [vmem:[%s1 + $0x34] sm:$0xf]
  %v105 = vld [vmem:[%s1 + $0x38] sm:$0xf]
  %v106 = vld [vmem:[%s1 + $0x3c] sm:$0xf]
  %v107 = vld [vmem:[%s2] sm:$0x1]
  %v109 = vlaneseq
  %v110 = vshrl.u32 %v109, 7
  %v111 = vsub.s32 0, %v110
  %v112 = vrot.slane %v107, %v111
  %v146 = vunpack.c.l.b16 %v59
  %v147 = vunpack.c.l.b16 %v60
  %v148 = vunpack.c.l.b16 %v61
  %v149 = vunpack.c.l.b16 %v62
  %v150 = vunpack.c.l.b16 %v63
  %v151 = vunpack.c.l.b16 %v64
  %v152 = vunpack.c.l.b16 %v65
  %v153 = vunpack.c.l.b16 %v66
  %v154 = vunpack.c.l.b16 %v67
  %v155 = vunpack.c.l.b16 %v68
  %v156 = vunpack.c.l.b16 %v69
  %v157 = vunpack.c.l.b16 %v70
  %v158 = vunpack.c.l.b16 %v71
  %v159 = vunpack.c.l.b16 %v72
  %v160 = vunpack.c.l.b16 %v73
  %v161 = vunpack.c.l.b16 %v74
  %v162 = vunpack.c.l.b16 %v75
  %v163 = vunpack.c.l.b16 %v76
  %v164 = vunpack.c.l.b16 %v77
  %v165 = vunpack.c.l.b16 %v78
  %v166 = vunpack.c.l.b16 %v79
  %v167 = vunpack.c.l.b16 %v80
  %v168 = vunpack.c.l.b16 %v81
  %v169 = vunpack.c.l.b16 %v82
  %v170 = vunpack.c.l.b16 %v83
  %v171 = vunpack.c.l.b16 %v84
  %v172 = vunpack.c.l.b16 %v85
  %v173 = vunpack.c.l.b16 %v86
  %v174 = vunpack.c.l.b16 %v87
  %v175 = vunpack.c.l.b16 %v88
  %v176 = vunpack.c.l.b16 %v89
  %v177 = vunpack.c.l.b16 %v90
  %v178 = vpack.c.b16 %v147, %v146
  %v179 = vpack.c.b16 %v149, %v148
  %v180 = vpack.c.b16 %v151, %v150
  %v181 = vpack.c.b16 %v153, %v152
  %v182 = vpack.c.b16 %v155, %v154
  %v183 = vpack.c.b16 %v157, %v156
  %v184 = vpack.c.b16 %v159, %v158
  %v185 = vpack.c.b16 %v161, %v160
  %v186 = vpack.c.b16 %v163, %v162
  %v187 = vpack.c.b16 %v165, %v164
  %v188 = vpack.c.b16 %v167, %v166
  %v189 = vpack.c.b16 %v169, %v168
  %v190 = vpack.c.b16 %v171, %v170
  %v191 = vpack.c.b16 %v173, %v172
  %v192 = vpack.c.b16 %v175, %v174
  %v193 = vpack.c.b16 %v177, %v176
  %v226 = vunpack.c.l.b16 %v91
  %v227 = vunpack.c.l.b16 %v92
  %v228 = vunpack.c.l.b16 %v93
  %v229 = vunpack.c.l.b16 %v94
  %v230 = vunpack.c.l.b16 %v95
  %v231 = vunpack.c.l.b16 %v96
  %v232 = vunpack.c.l.b16 %v97
  %v233 = vunpack.c.l.b16 %v98
  %v234 = vunpack.c.l.b16 %v99
  %v235 = vunpack.c.l.b16 %v100
  %v236 = vunpack.c.l.b16 %v101
  %v237 = vunpack.c.l.b16 %v102
  %v238 = vunpack.c.l.b16 %v103
  %v239 = vunpack.c.l.b16 %v104
  %v240 = vunpack.c.l.b16 %v105
  %v241 = vunpack.c.l.b16 %v106
  %v242 = vpack.c.b16 %v227, %v226
  %v243 = vpack.c.b16 %v229, %v228
  %v244 = vpack.c.b16 %v231, %v230
  %v245 = vpack.c.b16 %v233, %v232
  %v246 = vpack.c.b16 %v235, %v234
  %v247 = vpack.c.b16 %v237, %v236
  %v248 = vpack.c.b16 %v239, %v238
  %v249 = vpack.c.b16 %v241, %v240
  %258 = vmatprep.subr.bf16.mxu0 0
  %259 = vmatpush1.bf16.msra.mxu0 %v242
  %260 = vmatprep.subr.bf16.mxu0 0
  %261 = vmatpush1.bf16.msra.mxu0 %v243
  %262 = vmatprep.subr.bf16.mxu0 0
  %263 = vmatpush1.bf16.msra.mxu0 %v244
  %264 = vmatprep.subr.bf16.mxu0 0
  %265 = vmatpush1.bf16.msra.mxu0 %v245
  %266 = vmatprep.subr.bf16.mxu0 0
  %267 = vmatpush1.bf16.msra.mxu0 %v246
  %268 = vmatprep.subr.bf16.mxu0 0
  %269 = vmatpush1.bf16.msra.mxu0 %v247
  %270 = vmatprep.subr.bf16.mxu0 0
  %271 = vmatpush1.bf16.msra.mxu0 %v248
  %272 = vmatprep.subr.bf16.mxu0 0
  %273 = vmatpush1.bf16.msra.mxu0 %v249
  %274 = vmatprep.subr.bf16.mxu0 0
  %275 = vmatpush1.bf16.msra.mxu0 0
  %276 = vmatprep.subr.bf16.mxu0 0
  %277 = vmatpush1.bf16.msra.mxu0 0
  %278 = vmatprep.subr.bf16.mxu0 0
  %279 = vmatpush1.bf16.msra.mxu0 0
  %280 = vmatprep.subr.bf16.mxu0 0
  %281 = vmatpush1.bf16.msra.mxu0 0
  %282 = vmatprep.subr.bf16.mxu0 0
  %283 = vmatpush1.bf16.msra.mxu0 0
  %284 = vmatprep.subr.bf16.mxu0 0
  %285 = vmatpush1.bf16.msra.mxu0 0
  %286 = vmatprep.subr.bf16.mxu0 0
  %287 = vmatpush1.bf16.msra.mxu0 0
  %288 = vmatprep.subr.bf16.mxu0 0
  %289 = vmatpush1.bf16.msra.mxu0 0
  %290 = vmatprep.mubr.bf16.mxu0 0
  %291 = vmatmul.mubr.bf16.gmra.mrb[0].mxu0 %v178
  %v292 = vpop.f32.mrb[0].mxu0
  %v293 = vadd.f32 %v112, %v292
  %v294 = vpop.f32.mrb[0].mxu0
  %v295 = vpop.f32.mrb[0].mxu0
  %v296 = vadd.f32 %v112, %v295
  %v297 = vpop.f32.mrb[0].mxu0
  %298 = vmatprep.mubr.bf16.mxu0 0
  %299 = vmatmul.mubr.bf16.gmra.mrb[0].mxu0 %v179
  %v300 = vpop.f32.mrb[0].mxu0
  %v301 = vadd.f32 %v112, %v300
  %v302 = vpop.f32.mrb[0].mxu0
  %v303 = vpop.f32.mrb[0].mxu0
  %v304 = vadd.f32 %v112, %v303
  %v305 = vpop.f32.mrb[0].mxu0
  %306 = vmatprep.mubr.bf16.mxu0 0
  %307 = vmatmul.mubr.bf16.gmra.mrb[0].mxu0 %v180
  %v308 = vpop.f32.mrb[0].mxu0
  %v309 = vadd.f32 %v112, %v308
  %v310 = vpop.f32.mrb[0].mxu0
  %v311 = vpop.f32.mrb[0].mxu0
  %v312 = vadd.f32 %v112, %v311
  %v313 = vpop.f32.mrb[0].mxu0
  %314 = vmatprep.mubr.bf16.mxu0 0
  %315 = vmatmul.mubr.bf16.gmra.mrb[0].mxu0 %v181
  %v316 = vpop.f32.mrb[0].mxu0
  %v317 = vadd.f32 %v112, %v316
  %v318 = vpop.f32.mrb[0].mxu0
  %v319 = vpop.f32.mrb[0].mxu0
  %v320 = vadd.f32 %v112, %v319
  %v321 = vpop.f32.mrb[0].mxu0
  %322 = vmatprep.mubr.bf16.mxu0 0
  %323 = vmatmul.mubr.bf16.gmra.mrb[0].mxu0 %v182
  %v324 = vpop.f32.mrb[0].mxu0
  %v325 = vadd.f32 %v112, %v324
  %v326 = vpop.f32.mrb[0].mxu0
  %v327 = vpop.f32.mrb[0].mxu0
  %v328 = vadd.f32 %v112, %v327
  %v329 = vpop.f32.mrb[0].mxu0
  %330 = vmatprep.mubr.bf16.mxu0 0
  %331 = vmatmul.mubr.bf16.gmra.mrb[0].mxu0 %v183
  %v332 = vpop.f32.mrb[0].mxu0
  %v333 = vadd.f32 %v112, %v332
  %v334 = vpop.f32.mrb[0].mxu0
  %v335 = vpop.f32.mrb[0].mxu0
  %v336 = vadd.f32 %v112, %v335
  %v337 = vpop.f32.mrb[0].mxu0
  %338 = vmatprep.mubr.bf16.mxu0 0
  %339 = vmatmul.mubr.bf16.gmra.mrb[0].mxu0 %v184
  %v340 = vpop.f32.mrb[0].mxu0
  %v341 = vadd.f32 %v112, %v340
  %v342 = vpop.f32.mrb[0].mxu0
  %v343 = vpop.f32.mrb[0].mxu0
  %v344 = vadd.f32 %v112, %v343
  %v345 = vpop.f32.mrb[0].mxu0
  %346 = vmatprep.mubr.bf16.mxu0 0
  %347 = vmatmul.mubr.bf16.gmra.mrb[0].mxu0 %v185
  %v348 = vpop.f32.mrb[0].mxu0
  %v349 = vadd.f32 %v112, %v348
  %v350 = vpop.f32.mrb[0].mxu0
  %v351 = vpop.f32.mrb[0].mxu0
  %v352 = vadd.f32 %v112, %v351
  %v353 = vpop.f32.mrb[0].mxu0
  %354 = vmatprep.mubr.bf16.mxu0 0
  %355 = vmatmul.mubr.bf16.gmra.mrb[0].mxu0 %v186
  %v356 = vpop.f32.mrb[0].mxu0
  %v357 = vadd.f32 %v112, %v356
  %v358 = vpop.f32.mrb[0].mxu0
  %v359 = vpop.f32.mrb[0].mxu0
  %v360 = vadd.f32 %v112, %v359
  %v361 = vpop.f32.mrb[0].mxu0
  %362 = vmatprep.mubr.bf16.mxu0 0
  %363 = vmatmul.mubr.bf16.gmra.mrb[0].mxu0 %v187
  %v364 = vpop.f32.mrb[0].mxu0
  %v365 = vadd.f32 %v112, %v364
  %v366 = vpop.f32.mrb[0].mxu0
  %v367 = vpop.f32.mrb[0].mxu0
  %v368 = vadd.f32 %v112, %v367
  %v369 = vpop.f32.mrb[0].mxu0
  %370 = vmatprep.mubr.bf16.mxu0 0
  %371 = vmatmul.mubr.bf16.gmra.mrb[0].mxu0 %v188
  %v372 = vpop.f32.mrb[0].mxu0
  %v373 = vadd.f32 %v112, %v372
  %v374 = vpop.f32.mrb[0].mxu0
  %v375 = vpop.f32.mrb[0].mxu0
  %v376 = vadd.f32 %v112, %v375
  %v377 = vpop.f32.mrb[0].mxu0
  %378 = vmatprep.mubr.bf16.mxu0 0
  %379 = vmatmul.mubr.bf16.gmra.mrb[0].mxu0 %v189
  %v380 = vpop.f32.mrb[0].mxu0
  %v381 = vadd.f32 %v112, %v380
  %v382 = vpop.f32.mrb[0].mxu0
  %v383 = vpop.f32.mrb[0].mxu0
  %v384 = vadd.f32 %v112, %v383
  %v385 = vpop.f32.mrb[0].mxu0
  %386 = vmatprep.mubr.bf16.mxu0 0
  %387 = vmatmul.mubr.bf16.gmra.mrb[0].mxu0 %v190
  %v388 = vpop.f32.mrb[0].mxu0
  %v389 = vadd.f32 %v112, %v388
  %v390 = vpop.f32.mrb[0].mxu0
  %v391 = vpop.f32.mrb[0].mxu0
  %v392 = vadd.f32 %v112, %v391
  %v393 = vpop.f32.mrb[0].mxu0
  %394 = vmatprep.mubr.bf16.mxu0 0
  %395 = vmatmul.mubr.bf16.gmra.mrb[0].mxu0 %v191
  %v396 = vpop.f32.mrb[0].mxu0
  %v397 = vadd.f32 %v112, %v396
  %v398 = vpop.f32.mrb[0].mxu0
  %v399 = vpop.f32.mrb[0].mxu0
  %v400 = vadd.f32 %v112, %v399
  %v401 = vpop.f32.mrb[0].mxu0
  %402 = vmatprep.mubr.bf16.mxu0 0
  %403 = vmatmul.mubr.bf16.gmra.mrb[0].mxu0 %v192
  %v404 = vpop.f32.mrb[0].mxu0
  %v405 = vadd.f32 %v112, %v404
  %v406 = vpop.f32.mrb[0].mxu0
  %v407 = vpop.f32.mrb[0].mxu0
  %v408 = vadd.f32 %v112, %v407
  %v409 = vpop.f32.mrb[0].mxu0
  %410 = vmatprep.mubr.bf16.mxu0 0
  %411 = vmatmul.mubr.bf16.gmra.mrb[0].mxu0 %v193
  %v412 = vpop.f32.mrb[0].mxu0
  %v413 = vadd.f32 %v112, %v412
  %v414 = vpop.f32.mrb[0].mxu0
  %v415 = vpop.f32.mrb[0].mxu0
  %v416 = vadd.f32 %v112, %v415
  %v417 = vpop.f32.mrb[0].mxu0
  %418 = vdwg.mxu0
  %v419 = vmax.f32 %v293, 0.0
  %v420 = vmax.f32 %v296, 0.0
  %v421 = vmax.f32 %v301, 0.0
  %v422 = vmax.f32 %v304, 0.0
  %v423 = vmax.f32 %v309, 0.0
  %v424 = vmax.f32 %v312, 0.0
  %v425 = vmax.f32 %v317, 0.0
  %v426 = vmax.f32 %v320, 0.0
  %v427 = vmax.f32 %v325, 0.0
  %v428 = vmax.f32 %v328, 0.0
  %v429 = vmax.f32 %v333, 0.0
  %v430 = vmax.f32 %v336, 0.0
  %v431 = vmax.f32 %v341, 0.0
  %v432 = vmax.f32 %v344, 0.0
  %v433 = vmax.f32 %v349, 0.0
  %v434 = vmax.f32 %v352, 0.0
  %v435 = vmax.f32 %v357, 0.0
  %v436 = vmax.f32 %v360, 0.0
  %v437 = vmax.f32 %v365, 0.0
  %v438 = vmax.f32 %v368, 0.0
  %v439 = vmax.f32 %v373, 0.0
  %v440 = vmax.f32 %v376, 0.0
  %v441 = vmax.f32 %v381, 0.0
  %v442 = vmax.f32 %v384, 0.0
  %v443 = vmax.f32 %v389, 0.0
  %v444 = vmax.f32 %v392, 0.0
  %v445 = vmax.f32 %v397, 0.0
  %v446 = vmax.f32 %v400, 0.0
  %v447 = vmax.f32 %v405, 0.0
  %v448 = vmax.f32 %v408, 0.0
  %v449 = vmax.f32 %v413, 0.0
  %v450 = vmax.f32 %v416, 0.0
  %v451 = vpack.c.bf16 %v420, %v419
  %v452 = vpack.c.bf16 %v422, %v421
  %v453 = vpack.c.bf16 %v424, %v423
  %v454 = vpack.c.bf16 %v426, %v425
  %v455 = vpack.c.bf16 %v428, %v427
  %v456 = vpack.c.bf16 %v430, %v429
  %v457 = vpack.c.bf16 %v432, %v431
  %v458 = vpack.c.bf16 %v434, %v433
  %v459 = vpack.c.bf16 %v436, %v435
  %v460 = vpack.c.bf16 %v438, %v437
  %v461 = vpack.c.bf16 %v440, %v439
  %v462 = vpack.c.bf16 %v442, %v441
  %v463 = vpack.c.bf16 %v444, %v443
  %v464 = vpack.c.bf16 %v446, %v445
  %v465 = vpack.c.bf16 %v448, %v447
  %v466 = vpack.c.bf16 %v450, %v449
  %v467 = vld [vmem:[%s3] sm:$0xf]
  %v468 = vld [vmem:[%s3 + $0x4] sm:$0xf]
  %v469 = vld [vmem:[%s3 + $0x8] sm:$0xf]
  %v470 = vld [vmem:[%s3 + $0xc] sm:$0xf]
  %v471 = vld [vmem:[%s3 + $0x10] sm:$0xf]
  %v472 = vld [vmem:[%s3 + $0x14] sm:$0xf]
  %v473 = vld [vmem:[%s3 + $0x18] sm:$0xf]
  %v474 = vld [vmem:[%s3 + $0x1c] sm:$0xf]
  %v475 = vld [vmem:[%s3 + $0x20] sm:$0xf]
  %v476 = vld [vmem:[%s3 + $0x24] sm:$0xf]
  %v477 = vld [vmem:[%s3 + $0x28] sm:$0xf]
  %v478 = vld [vmem:[%s3 + $0x2c] sm:$0xf]
  %v479 = vld [vmem:[%s3 + $0x30] sm:$0xf]
  %v480 = vld [vmem:[%s3 + $0x34] sm:$0xf]
  %v481 = vld [vmem:[%s3 + $0x38] sm:$0xf]
  %v482 = vld [vmem:[%s3 + $0x3c] sm:$0xf]
  %v483 = vld [vmem:[%s4] sm:$0x1]
  %v485 = vlaneseq
  %v486 = vshrl.u32 %v485, 7
  %v487 = vsub.s32 0, %v486
  %v488 = vrot.slane %v483, %v487
  %v506 = vunpack.c.l.b16 %v467
  %v507 = vunpack.c.l.b16 %v468
  %v508 = vunpack.c.l.b16 %v469
  %v509 = vunpack.c.l.b16 %v470
  %v510 = vunpack.c.l.b16 %v471
  %v511 = vunpack.c.l.b16 %v472
  %v512 = vunpack.c.l.b16 %v473
  %v513 = vunpack.c.l.b16 %v474
  %v514 = vunpack.c.l.b16 %v475
  %v515 = vunpack.c.l.b16 %v476
  %v516 = vunpack.c.l.b16 %v477
  %v517 = vunpack.c.l.b16 %v478
  %v518 = vunpack.c.l.b16 %v479
  %v519 = vunpack.c.l.b16 %v480
  %v520 = vunpack.c.l.b16 %v481
  %v521 = vunpack.c.l.b16 %v482
  %v522 = vpack.c.b16 %v507, %v506
  %v523 = vpack.c.b16 %v509, %v508
  %v524 = vpack.c.b16 %v511, %v510
  %v525 = vpack.c.b16 %v513, %v512
  %v526 = vpack.c.b16 %v515, %v514
  %v527 = vpack.c.b16 %v517, %v516
  %v528 = vpack.c.b16 %v519, %v518
  %v529 = vpack.c.b16 %v521, %v520
  %538 = vmatprep.subr.bf16.mxu0 0
  %539 = vmatpush1.bf16.msra.mxu0 %v522
  %540 = vmatprep.subr.bf16.mxu0 0
  %541 = vmatpush1.bf16.msra.mxu0 %v523
  %542 = vmatprep.subr.bf16.mxu0 0
  %543 = vmatpush1.bf16.msra.mxu0 %v524
  %544 = vmatprep.subr.bf16.mxu0 0
  %545 = vmatpush1.bf16.msra.mxu0 %v525
  %546 = vmatprep.subr.bf16.mxu0 0
  %547 = vmatpush1.bf16.msra.mxu0 %v526
  %548 = vmatprep.subr.bf16.mxu0 0
  %549 = vmatpush1.bf16.msra.mxu0 %v527
  %550 = vmatprep.subr.bf16.mxu0 0
  %551 = vmatpush1.bf16.msra.mxu0 %v528
  %552 = vmatprep.subr.bf16.mxu0 0
  %553 = vmatpush1.bf16.msra.mxu0 %v529
  %554 = vmatprep.subr.bf16.mxu0 0
  %555 = vmatpush1.bf16.msra.mxu0 0
  %556 = vmatprep.subr.bf16.mxu0 0
  %557 = vmatpush1.bf16.msra.mxu0 0
  %558 = vmatprep.subr.bf16.mxu0 0
  %559 = vmatpush1.bf16.msra.mxu0 0
  %560 = vmatprep.subr.bf16.mxu0 0
  %561 = vmatpush1.bf16.msra.mxu0 0
  %562 = vmatprep.subr.bf16.mxu0 0
  %563 = vmatpush1.bf16.msra.mxu0 0
  %564 = vmatprep.subr.bf16.mxu0 0
  %565 = vmatpush1.bf16.msra.mxu0 0
  %566 = vmatprep.subr.bf16.mxu0 0
  %567 = vmatpush1.bf16.msra.mxu0 0
  %568 = vmatprep.subr.bf16.mxu0 0
  %569 = vmatpush1.bf16.msra.mxu0 0
  %570 = vmatprep.mubr.bf16.mxu0 0
  %571 = vmatmul.mubr.bf16.gmra.mrb[0].mxu0 %v451
  %v572 = vpop.f32.mrb[0].mxu0
  %v573 = vadd.f32 %v488, %v572
  %v574 = vpop.f32.mrb[0].mxu0
  %v575 = vpop.f32.mrb[0].mxu0
  %v576 = vadd.f32 %v488, %v575
  %v577 = vpop.f32.mrb[0].mxu0
  %578 = vmatprep.mubr.bf16.mxu0 0
  %579 = vmatmul.mubr.bf16.gmra.mrb[0].mxu0 %v452
  %v580 = vpop.f32.mrb[0].mxu0
  %v581 = vadd.f32 %v488, %v580
  %v582 = vpop.f32.mrb[0].mxu0
  %v583 = vpop.f32.mrb[0].mxu0
  %v584 = vadd.f32 %v488, %v583
  %v585 = vpop.f32.mrb[0].mxu0
  %586 = vmatprep.mubr.bf16.mxu0 0
  %587 = vmatmul.mubr.bf16.gmra.mrb[0].mxu0 %v453
  %v588 = vpop.f32.mrb[0].mxu0
  %v589 = vadd.f32 %v488, %v588
  %v590 = vpop.f32.mrb[0].mxu0
  %v591 = vpop.f32.mrb[0].mxu0
  %v592 = vadd.f32 %v488, %v591
  %v593 = vpop.f32.mrb[0].mxu0
  %594 = vmatprep.mubr.bf16.mxu0 0
  %595 = vmatmul.mubr.bf16.gmra.mrb[0].mxu0 %v454
  %v596 = vpop.f32.mrb[0].mxu0
  %v597 = vadd.f32 %v488, %v596
  %v598 = vpop.f32.mrb[0].mxu0
  %v599 = vpop.f32.mrb[0].mxu0
  %v600 = vadd.f32 %v488, %v599
  %v601 = vpop.f32.mrb[0].mxu0
  %602 = vmatprep.mubr.bf16.mxu0 0
  %603 = vmatmul.mubr.bf16.gmra.mrb[0].mxu0 %v455
  %v604 = vpop.f32.mrb[0].mxu0
  %v605 = vadd.f32 %v488, %v604
  %v606 = vpop.f32.mrb[0].mxu0
  %v607 = vpop.f32.mrb[0].mxu0
  %v608 = vadd.f32 %v488, %v607
  %v609 = vpop.f32.mrb[0].mxu0
  %610 = vmatprep.mubr.bf16.mxu0 0
  %611 = vmatmul.mubr.bf16.gmra.mrb[0].mxu0 %v456
  %v612 = vpop.f32.mrb[0].mxu0
  %v613 = vadd.f32 %v488, %v612
  %v614 = vpop.f32.mrb[0].mxu0
  %v615 = vpop.f32.mrb[0].mxu0
  %v616 = vadd.f32 %v488, %v615
  %v617 = vpop.f32.mrb[0].mxu0
  %618 = vmatprep.mubr.bf16.mxu0 0
  %619 = vmatmul.mubr.bf16.gmra.mrb[0].mxu0 %v457
  %v620 = vpop.f32.mrb[0].mxu0
  %v621 = vadd.f32 %v488, %v620
  %v622 = vpop.f32.mrb[0].mxu0
  %v623 = vpop.f32.mrb[0].mxu0
  %v624 = vadd.f32 %v488, %v623
  %v625 = vpop.f32.mrb[0].mxu0
  %626 = vmatprep.mubr.bf16.mxu0 0
  %627 = vmatmul.mubr.bf16.gmra.mrb[0].mxu0 %v458
  %v628 = vpop.f32.mrb[0].mxu0
  %v629 = vadd.f32 %v488, %v628
  %v630 = vpop.f32.mrb[0].mxu0
  %v631 = vpop.f32.mrb[0].mxu0
  %v632 = vadd.f32 %v488, %v631
  %v633 = vpop.f32.mrb[0].mxu0
  %634 = vmatprep.mubr.bf16.mxu0 0
  %635 = vmatmul.mubr.bf16.gmra.mrb[0].mxu0 %v459
  %v636 = vpop.f32.mrb[0].mxu0
  %v637 = vadd.f32 %v488, %v636
  %v638 = vpop.f32.mrb[0].mxu0
  %v639 = vpop.f32.mrb[0].mxu0
  %v640 = vadd.f32 %v488, %v639
  %v641 = vpop.f32.mrb[0].mxu0
  %642 = vmatprep.mubr.bf16.mxu0 0
  %643 = vmatmul.mubr.bf16.gmra.mrb[0].mxu0 %v460
  %v644 = vpop.f32.mrb[0].mxu0
  %v645 = vadd.f32 %v488, %v644
  %v646 = vpop.f32.mrb[0].mxu0
  %v647 = vpop.f32.mrb[0].mxu0
  %v648 = vadd.f32 %v488, %v647
  %v649 = vpop.f32.mrb[0].mxu0
  %650 = vmatprep.mubr.bf16.mxu0 0
  %651 = vmatmul.mubr.bf16.gmra.mrb[0].mxu0 %v461
  %v652 = vpop.f32.mrb[0].mxu0
  %v653 = vadd.f32 %v488, %v652
  %v654 = vpop.f32.mrb[0].mxu0
  %v655 = vpop.f32.mrb[0].mxu0
  %v656 = vadd.f32 %v488, %v655
  %v657 = vpop.f32.mrb[0].mxu0
  %658 = vmatprep.mubr.bf16.mxu0 0
  %659 = vmatmul.mubr.bf16.gmra.mrb[0].mxu0 %v462
  %v660 = vpop.f32.mrb[0].mxu0
  %v661 = vadd.f32 %v488, %v660
  %v662 = vpop.f32.mrb[0].mxu0
  %v663 = vpop.f32.mrb[0].mxu0
  %v664 = vadd.f32 %v488, %v663
  %v665 = vpop.f32.mrb[0].mxu0
  %666 = vmatprep.mubr.bf16.mxu0 0
  %667 = vmatmul.mubr.bf16.gmra.mrb[0].mxu0 %v463
  %v668 = vpop.f32.mrb[0].mxu0
  %v669 = vadd.f32 %v488, %v668
  %v670 = vpop.f32.mrb[0].mxu0
  %v671 = vpop.f32.mrb[0].mxu0
  %v672 = vadd.f32 %v488, %v671
  %v673 = vpop.f32.mrb[0].mxu0
  %674 = vmatprep.mubr.bf16.mxu0 0
  %675 = vmatmul.mubr.bf16.gmra.mrb[0].mxu0 %v464
  %v676 = vpop.f32.mrb[0].mxu0
  %v677 = vadd.f32 %v488, %v676
  %v678 = vpop.f32.mrb[0].mxu0
  %v679 = vpop.f32.mrb[0].mxu0
  %v680 = vadd.f32 %v488, %v679
  %v681 = vpop.f32.mrb[0].mxu0
  %682 = vmatprep.mubr.bf16.mxu0 0
  %683 = vmatmul.mubr.bf16.gmra.mrb[0].mxu0 %v465
  %v684 = vpop.f32.mrb[0].mxu0
  %v685 = vadd.f32 %v488, %v684
  %v686 = vpop.f32.mrb[0].mxu0
  %v687 = vpop.f32.mrb[0].mxu0
  %v688 = vadd.f32 %v488, %v687
  %v689 = vpop.f32.mrb[0].mxu0
  %690 = vmatprep.mubr.bf16.mxu0 0
  %691 = vmatmul.mubr.bf16.gmra.mrb[0].mxu0 %v466
  %v692 = vpop.f32.mrb[0].mxu0
  %v693 = vadd.f32 %v488, %v692
  %v694 = vpop.f32.mrb[0].mxu0
  %v695 = vpop.f32.mrb[0].mxu0
  %v696 = vadd.f32 %v488, %v695
  %v697 = vpop.f32.mrb[0].mxu0
  %698 = vdwg.mxu0
  %v699 = vmax.f32 %v573, 0.0
  %v700 = vmax.f32 %v576, 0.0
  %v701 = vmax.f32 %v581, 0.0
  %v702 = vmax.f32 %v584, 0.0
  %v703 = vmax.f32 %v589, 0.0
  %v704 = vmax.f32 %v592, 0.0
  %v705 = vmax.f32 %v597, 0.0
  %v706 = vmax.f32 %v600, 0.0
  %v707 = vmax.f32 %v605, 0.0
  %v708 = vmax.f32 %v608, 0.0
  %v709 = vmax.f32 %v613, 0.0
  %v710 = vmax.f32 %v616, 0.0
  %v711 = vmax.f32 %v621, 0.0
  %v712 = vmax.f32 %v624, 0.0
  %v713 = vmax.f32 %v629, 0.0
  %v714 = vmax.f32 %v632, 0.0
  %v715 = vmax.f32 %v637, 0.0
  %v716 = vmax.f32 %v640, 0.0
  %v717 = vmax.f32 %v645, 0.0
  %v718 = vmax.f32 %v648, 0.0
  %v719 = vmax.f32 %v653, 0.0
  %v720 = vmax.f32 %v656, 0.0
  %v721 = vmax.f32 %v661, 0.0
  %v722 = vmax.f32 %v664, 0.0
  %v723 = vmax.f32 %v669, 0.0
  %v724 = vmax.f32 %v672, 0.0
  %v725 = vmax.f32 %v677, 0.0
  %v726 = vmax.f32 %v680, 0.0
  %v727 = vmax.f32 %v685, 0.0
  %v728 = vmax.f32 %v688, 0.0
  %v729 = vmax.f32 %v693, 0.0
  %v730 = vmax.f32 %v696, 0.0
  %v731 = vpack.c.bf16 %v700, %v699
  %v732 = vpack.c.bf16 %v702, %v701
  %v733 = vpack.c.bf16 %v704, %v703
  %v734 = vpack.c.bf16 %v706, %v705
  %v735 = vpack.c.bf16 %v708, %v707
  %v736 = vpack.c.bf16 %v710, %v709
  %v737 = vpack.c.bf16 %v712, %v711
  %v738 = vpack.c.bf16 %v714, %v713
  %v739 = vpack.c.bf16 %v716, %v715
  %v740 = vpack.c.bf16 %v718, %v717
  %v741 = vpack.c.bf16 %v720, %v719
  %v742 = vpack.c.bf16 %v722, %v721
  %v743 = vpack.c.bf16 %v724, %v723
  %v744 = vpack.c.bf16 %v726, %v725
  %v745 = vpack.c.bf16 %v728, %v727
  %v746 = vpack.c.bf16 %v730, %v729
  %v747 = vld [vmem:[%s5] sm:$0xf]
  %v748 = vld [vmem:[%s5 + $0x4] sm:$0xf]
  %v749 = vld [vmem:[%s5 + $0x8] sm:$0xf]
  %v750 = vld [vmem:[%s5 + $0xc] sm:$0xf]
  %v751 = vld [vmem:[%s5 + $0x10] sm:$0xf]
  %v752 = vld [vmem:[%s5 + $0x14] sm:$0xf]
  %v753 = vld [vmem:[%s5 + $0x18] sm:$0xf]
  %v754 = vld [vmem:[%s5 + $0x1c] sm:$0xf]
  %v755 = vld [vmem:[%s5 + $0x20] sm:$0xf]
  %v756 = vld [vmem:[%s5 + $0x24] sm:$0xf]
  %v757 = vld [vmem:[%s5 + $0x28] sm:$0xf]
  %v758 = vld [vmem:[%s5 + $0x2c] sm:$0xf]
  %v759 = vld [vmem:[%s5 + $0x30] sm:$0xf]
  %v760 = vld [vmem:[%s5 + $0x34] sm:$0xf]
  %v761 = vld [vmem:[%s5 + $0x38] sm:$0xf]
  %v762 = vld [vmem:[%s5 + $0x3c] sm:$0xf]
  %v763 = vld [vmem:[%s6] sm:$0x1]
  %v765 = vlaneseq
  %v766 = vshrl.u32 %v765, 7
  %v767 = vsub.s32 0, %v766
  %v768 = vrot.slane %v763, %v767
  %v786 = vunpack.c.l.b16 %v747
  %v787 = vunpack.c.l.b16 %v748
  %v788 = vunpack.c.l.b16 %v749
  %v789 = vunpack.c.l.b16 %v750
  %v790 = vunpack.c.l.b16 %v751
  %v791 = vunpack.c.l.b16 %v752
  %v792 = vunpack.c.l.b16 %v753
  %v793 = vunpack.c.l.b16 %v754
  %v794 = vunpack.c.l.b16 %v755
  %v795 = vunpack.c.l.b16 %v756
  %v796 = vunpack.c.l.b16 %v757
  %v797 = vunpack.c.l.b16 %v758
  %v798 = vunpack.c.l.b16 %v759
  %v799 = vunpack.c.l.b16 %v760
  %v800 = vunpack.c.l.b16 %v761
  %v801 = vunpack.c.l.b16 %v762
  %v802 = vpack.c.b16 %v787, %v786
  %v803 = vpack.c.b16 %v789, %v788
  %v804 = vpack.c.b16 %v791, %v790
  %v805 = vpack.c.b16 %v793, %v792
  %v806 = vpack.c.b16 %v795, %v794
  %v807 = vpack.c.b16 %v797, %v796
  %v808 = vpack.c.b16 %v799, %v798
  %v809 = vpack.c.b16 %v801, %v800
  %818 = vmatprep.subr.bf16.mxu0 0
  %819 = vmatpush1.bf16.msra.mxu0 %v802
  %820 = vmatprep.subr.bf16.mxu0 0
  %821 = vmatpush1.bf16.msra.mxu0 %v803
  %822 = vmatprep.subr.bf16.mxu0 0
  %823 = vmatpush1.bf16.msra.mxu0 %v804
  %824 = vmatprep.subr.bf16.mxu0 0
  %825 = vmatpush1.bf16.msra.mxu0 %v805
  %826 = vmatprep.subr.bf16.mxu0 0
  %827 = vmatpush1.bf16.msra.mxu0 %v806
  %828 = vmatprep.subr.bf16.mxu0 0
  %829 = vmatpush1.bf16.msra.mxu0 %v807
  %830 = vmatprep.subr.bf16.mxu0 0
  %831 = vmatpush1.bf16.msra.mxu0 %v808
  %832 = vmatprep.subr.bf16.mxu0 0
  %833 = vmatpush1.bf16.msra.mxu0 %v809
  %834 = vmatprep.subr.bf16.mxu0 0
  %835 = vmatpush1.bf16.msra.mxu0 0
  %836 = vmatprep.subr.bf16.mxu0 0
  %837 = vmatpush1.bf16.msra.mxu0 0
  %838 = vmatprep.subr.bf16.mxu0 0
  %839 = vmatpush1.bf16.msra.mxu0 0
  %840 = vmatprep.subr.bf16.mxu0 0
  %841 = vmatpush1.bf16.msra.mxu0 0
  %842 = vmatprep.subr.bf16.mxu0 0
  %843 = vmatpush1.bf16.msra.mxu0 0
  %844 = vmatprep.subr.bf16.mxu0 0
  %845 = vmatpush1.bf16.msra.mxu0 0
  %846 = vmatprep.subr.bf16.mxu0 0
  %847 = vmatpush1.bf16.msra.mxu0 0
  %848 = vmatprep.subr.bf16.mxu0 0
  %849 = vmatpush1.bf16.msra.mxu0 0
  %850 = vmatprep.mubr.bf16.mxu0 0
  %851 = vmatmul.mubr.bf16.gmra.mrb[0].mxu0 %v731
  %v852 = vpop.f32.mrb[0].mxu0
  %v853 = vadd.f32 %v768, %v852
  %v854 = vpop.f32.mrb[0].mxu0
  %v855 = vpop.f32.mrb[0].mxu0
  %v856 = vadd.f32 %v768, %v855
  %v857 = vpop.f32.mrb[0].mxu0
  %858 = vmatprep.mubr.bf16.mxu0 0
  %859 = vmatmul.mubr.bf16.gmra.mrb[0].mxu0 %v732
  %v860 = vpop.f32.mrb[0].mxu0
  %v861 = vadd.f32 %v768, %v860
  %v862 = vpop.f32.mrb[0].mxu0
  %v863 = vpop.f32.mrb[0].mxu0
  %v864 = vadd.f32 %v768, %v863
  %v865 = vpop.f32.mrb[0].mxu0
  %866 = vmatprep.mubr.bf16.mxu0 0
  %867 = vmatmul.mubr.bf16.gmra.mrb[0].mxu0 %v733
  %v868 = vpop.f32.mrb[0].mxu0
  %v869 = vadd.f32 %v768, %v868
  %v870 = vpop.f32.mrb[0].mxu0
  %v871 = vpop.f32.mrb[0].mxu0
  %v872 = vadd.f32 %v768, %v871
  %v873 = vpop.f32.mrb[0].mxu0
  %874 = vmatprep.mubr.bf16.mxu0 0
  %875 = vmatmul.mubr.bf16.gmra.mrb[0].mxu0 %v734
  %v876 = vpop.f32.mrb[0].mxu0
  %v877 = vadd.f32 %v768, %v876
  %v878 = vpop.f32.mrb[0].mxu0
  %v879 = vpop.f32.mrb[0].mxu0
  %v880 = vadd.f32 %v768, %v879
  %v881 = vpop.f32.mrb[0].mxu0
  %882 = vmatprep.mubr.bf16.mxu0 0
  %883 = vmatmul.mubr.bf16.gmra.mrb[0].mxu0 %v735
  %v884 = vpop.f32.mrb[0].mxu0
  %v885 = vadd.f32 %v768, %v884
  %v886 = vpop.f32.mrb[0].mxu0
  %v887 = vpop.f32.mrb[0].mxu0
  %v888 = vadd.f32 %v768, %v887
  %v889 = vpop.f32.mrb[0].mxu0
  %890 = vmatprep.mubr.bf16.mxu0 0
  %891 = vmatmul.mubr.bf16.gmra.mrb[0].mxu0 %v736
  %v892 = vpop.f32.mrb[0].mxu0
  %v893 = vadd.f32 %v768, %v892
  %v894 = vpop.f32.mrb[0].mxu0
  %v895 = vpop.f32.mrb[0].mxu0
  %v896 = vadd.f32 %v768, %v895
  %v897 = vpop.f32.mrb[0].mxu0
  %898 = vmatprep.mubr.bf16.mxu0 0
  %899 = vmatmul.mubr.bf16.gmra.mrb[0].mxu0 %v737
  %v900 = vpop.f32.mrb[0].mxu0
  %v901 = vadd.f32 %v768, %v900
  %v902 = vpop.f32.mrb[0].mxu0
  %v903 = vpop.f32.mrb[0].mxu0
  %v904 = vadd.f32 %v768, %v903
  %v905 = vpop.f32.mrb[0].mxu0
  %906 = vmatprep.mubr.bf16.mxu0 0
  %907 = vmatmul.mubr.bf16.gmra.mrb[0].mxu0 %v738
  %v908 = vpop.f32.mrb[0].mxu0
  %v909 = vadd.f32 %v768, %v908
  %v910 = vpop.f32.mrb[0].mxu0
  %v911 = vpop.f32.mrb[0].mxu0
  %v912 = vadd.f32 %v768, %v911
  %v913 = vpop.f32.mrb[0].mxu0
  %914 = vmatprep.mubr.bf16.mxu0 0
  %915 = vmatmul.mubr.bf16.gmra.mrb[0].mxu0 %v739
  %v916 = vpop.f32.mrb[0].mxu0
  %v917 = vadd.f32 %v768, %v916
  %v918 = vpop.f32.mrb[0].mxu0
  %v919 = vpop.f32.mrb[0].mxu0
  %v920 = vadd.f32 %v768, %v919
  %v921 = vpop.f32.mrb[0].mxu0
  %922 = vmatprep.mubr.bf16.mxu0 0
  %923 = vmatmul.mubr.bf16.gmra.mrb[0].mxu0 %v740
  %v924 = vpop.f32.mrb[0].mxu0
  %v925 = vadd.f32 %v768, %v924
  %v926 = vpop.f32.mrb[0].mxu0
  %v927 = vpop.f32.mrb[0].mxu0
  %v928 = vadd.f32 %v768, %v927
  %v929 = vpop.f32.mrb[0].mxu0
  %930 = vmatprep.mubr.bf16.mxu0 0
  %931 = vmatmul.mubr.bf16.gmra.mrb[0].mxu0 %v741
  %v932 = vpop.f32.mrb[0].mxu0
  %v933 = vadd.f32 %v768, %v932
  %v934 = vpop.f32.mrb[0].mxu0
  %v935 = vpop.f32.mrb[0].mxu0
  %v936 = vadd.f32 %v768, %v935
  %v937 = vpop.f32.mrb[0].mxu0
  %938 = vmatprep.mubr.bf16.mxu0 0
  %939 = vmatmul.mubr.bf16.gmra.mrb[0].mxu0 %v742
  %v940 = vpop.f32.mrb[0].mxu0
  %v941 = vadd.f32 %v768, %v940
  %v942 = vpop.f32.mrb[0].mxu0
  %v943 = vpop.f32.mrb[0].mxu0
  %v944 = vadd.f32 %v768, %v943
  %v945 = vpop.f32.mrb[0].mxu0
  %946 = vmatprep.mubr.bf16.mxu0 0
  %947 = vmatmul.mubr.bf16.gmra.mrb[0].mxu0 %v743
  %v948 = vpop.f32.mrb[0].mxu0
  %v949 = vadd.f32 %v768, %v948
  %v950 = vpop.f32.mrb[0].mxu0
  %v951 = vpop.f32.mrb[0].mxu0
  %v952 = vadd.f32 %v768, %v951
  %v953 = vpop.f32.mrb[0].mxu0
  %954 = vmatprep.mubr.bf16.mxu0 0
  %955 = vmatmul.mubr.bf16.gmra.mrb[0].mxu0 %v744
  %v956 = vpop.f32.mrb[0].mxu0
  %v957 = vadd.f32 %v768, %v956
  %v958 = vpop.f32.mrb[0].mxu0
  %v959 = vpop.f32.mrb[0].mxu0
  %v960 = vadd.f32 %v768, %v959
  %v961 = vpop.f32.mrb[0].mxu0
  %962 = vmatprep.mubr.bf16.mxu0 0
  %963 = vmatmul.mubr.bf16.gmra.mrb[0].mxu0 %v745
  %v964 = vpop.f32.mrb[0].mxu0
  %v965 = vadd.f32 %v768, %v964
  %v966 = vpop.f32.mrb[0].mxu0
  %v967 = vpop.f32.mrb[0].mxu0
  %v968 = vadd.f32 %v768, %v967
  %v969 = vpop.f32.mrb[0].mxu0
  %970 = vmatprep.mubr.bf16.mxu0 0
  %971 = vmatmul.mubr.bf16.gmra.mrb[0].mxu0 %v746
  %v972 = vpop.f32.mrb[0].mxu0
  %v973 = vadd.f32 %v768, %v972
  %v974 = vpop.f32.mrb[0].mxu0
  %v975 = vpop.f32.mrb[0].mxu0
  %v976 = vadd.f32 %v768, %v975
  %v977 = vpop.f32.mrb[0].mxu0
  %978 = vdwg.mxu0
  %979 = vst [vmem:[%s7] sm:$0xff] %v853
  %980 = vst [vmem:[%s7 + $0x8] sm:$0xff] %v856
  %981 = vst [vmem:[%s7 + $0x10] sm:$0xff] %v861
  %982 = vst [vmem:[%s7 + $0x18] sm:$0xff] %v864
  %983 = vst [vmem:[%s7 + $0x20] sm:$0xff] %v869
  %984 = vst [vmem:[%s7 + $0x28] sm:$0xff] %v872
  %985 = vst [vmem:[%s7 + $0x30] sm:$0xff] %v877
  %986 = vst [vmem:[%s7 + $0x38] sm:$0xff] %v880
  %987 = vst [vmem:[%s7 + $0x40] sm:$0xff] %v885
  %988 = vst [vmem:[%s7 + $0x48] sm:$0xff] %v888
  %989 = vst [vmem:[%s7 + $0x50] sm:$0xff] %v893
  %990 = vst [vmem:[%s7 + $0x58] sm:$0xff] %v896
  %991 = vst [vmem:[%s7 + $0x60] sm:$0xff] %v901
  %992 = vst [vmem:[%s7 + $0x68] sm:$0xff] %v904
  %993 = vst [vmem:[%s7 + $0x70] sm:$0xff] %v909
  %994 = vst [vmem:[%s7 + $0x78] sm:$0xff] %v912
  %995 = vst [vmem:[%s7 + $0x80] sm:$0xff] %v917
  %996 = vst [vmem:[%s7 + $0x88] sm:$0xff] %v920
  %997 = vst [vmem:[%s7 + $0x90] sm:$0xff] %v925
  %998 = vst [vmem:[%s7 + $0x98] sm:$0xff] %v928
  %999 = vst [vmem:[%s7 + $0xa0] sm:$0xff] %v933
  %1000 = vst [vmem:[%s7 + $0xa8] sm:$0xff] %v936
  %1001 = vst [vmem:[%s7 + $0xb0] sm:$0xff] %v941
  %1002 = vst [vmem:[%s7 + $0xb8] sm:$0xff] %v944
  %1003 = vst [vmem:[%s7 + $0xc0] sm:$0xff] %v949
  %1004 = vst [vmem:[%s7 + $0xc8] sm:$0xff] %v952
  %1005 = vst [vmem:[%s7 + $0xd0] sm:$0xff] %v957
  %1006 = vst [vmem:[%s7 + $0xd8] sm:$0xff] %v960
  %1007 = vst [vmem:[%s7 + $0xe0] sm:$0xff] %v965
  %1008 = vst [vmem:[%s7 + $0xe8] sm:$0xff] %v968
  %1009 = vst [vmem:[%s7 + $0xf0] sm:$0xff] %v973
  %1010 = vst [vmem:[%s7 + $0xf8] sm:$0xff] %v976
  // Predicated region
  $region30: #{my_rnn_forward.3} parent=0 // pred_check
    _
  $region31: #{my_rnn_forward.3} parent=0 // pred_check_branch
    %1012 = sbr.rel (0) target = $region33
  $region32: #{my_rnn_forward.3} parent=0 // pred_region
    _
  $region33: #{my_rnn_forward.3} parent=0 // pred_fallthru
    _
  // Predicated region
  $region34: #{my_rnn_forward.3} parent=0 // pred_check
    _
  $region35: #{my_rnn_forward.3} parent=0 // pred_check_branch
    %1014 = sbr.rel (0) target = $region37
  $region36: #{my_rnn_forward.3} parent=0 // pred_region
    _
  $region37: #{my_rnn_forward.3} parent=0 // pred_fallthru
    _

</llo_original>
